<compile_context>
chip_gen: v7x
topology: tpu7x:2x2x1
jax: 0.10.0
libtpu: 0.0.40
codegen_flags: <defaults>
</compile_context>

<pallas_src>
import math

import jax
import jax.numpy as jnp
from jax.experimental import pallas as pl
from jax.experimental.pallas import tpu as pltpu

# ---- model sizes -----------------------------------------------------------
HU = 10                 # hidden_size_u
HZ = 100                # hidden_size_z
NUM_OBJ = 8
NI = 2 * NUM_OBJ        # num_input = 16

HU_P = 16               # u1 lane-padded
HZ_P = 128              # z lane-padded

# ---- packed wide (width-128) parameter buffer row layout -------------------
R_W0Y = 0               # rows   0..15  : w0y^T   (16 x 100, rest zero)
R_W1ZU = 16             # rows  16..31  : w1zu^T  (10 x 100, rest zero)
R_W1Z = 32              # rows  32..159 : w1z^T   (100 x 100, rest zero)
R_W1Y = 160             # rows 160..175 : w1y^T   (16 x 100)
R_W1U = 176             # rows 176..191 : w1u^T   (10 x 100, rest zero)
R_OUT_W = 192           # rows 192..199 : output weight in row 192, rest zero
R_W0U_ROW = 200         # w0u^T as a single row
R_Z1_B = 201            # b_w0y + b_w0u
R_W1ZU_B = 202          # b_w1zu
R_Z2_B = 203            # b_w1z + b_w1y + b_w1u
ROWS_WIDE = 208

# ---- packed narrow (width-16) parameter buffer row layout ------------------
R_XU1_W = 0
R_XU1_B = 1
R_W0YU_W = 2
R_W0YU_B = 3
R_W1YU_B = 4
R_W1YU_W = 8            # rows 8..23 : w1yu^T (10 x 16, rest zero)
ROWS_NARROW = 24

_TRANS_B = (((1,), (1,)), ((), ()))     # contract last dims: A @ B^T


def _round_up(n, m):
    return ((n + m - 1) // m) * m


# =============================================================================
# Kernel
# =============================================================================
def make_picnn_kernel(compute_dtype):
    """compute_dtype: dtype the MXU operands are cast to (accumulation is f32)."""
    cd = compute_dtype

    def dot(a, b):
        return jnp.dot(a.astype(cd), b.astype(cd),
                       preferred_element_type=jnp.float32)

    def kernel(x_ref, y_ref, wb_ref, nb_ref, outb_ref, o_ref):
        relu = lambda a: jnp.maximum(a, 0.0)

        x = x_ref[...]                                   # (TB, 1)  f32
        y = y_ref[...]                                   # (TB, 16) f32
        tb = x.shape[0]

        # ---- narrow (width-16) params, static slices of the packed buffer --
        xu1_w = nb_ref[R_XU1_W:R_XU1_W + 1, :]           # (1, 16)
        xu1_b = nb_ref[R_XU1_B:R_XU1_B + 1, :]
        w0yu_w = nb_ref[R_W0YU_W:R_W0YU_W + 1, :]
        w0yu_b = nb_ref[R_W0YU_B:R_W0YU_B + 1, :]
        w1yu_w = nb_ref[R_W1YU_W:R_W1YU_W + HU_P, :]     # (16, 16)
        w1yu_b = nb_ref[R_W1YU_B:R_W1YU_B + 1, :]

        # ---- wide (width-128) params ----
        w0y_w = wb_ref[R_W0Y:R_W0Y + NI, :]              # (16, 128)
        w1zu_w = wb_ref[R_W1ZU:R_W1ZU + HU_P, :]         # (16, 128)
        w1z_w = wb_ref[R_W1Z:R_W1Z + HZ_P, :]            # (128, 128)
        w1y_w = wb_ref[R_W1Y:R_W1Y + NI, :]              # (16, 128)
        w1u_w = wb_ref[R_W1U:R_W1U + HU_P, :]            # (16, 128)
        out_w8 = wb_ref[R_OUT_W:R_OUT_W + 8, :]          # (8, 128); row 0 = out w
        w0u_row = wb_ref[R_W0U_ROW:R_W0U_ROW + 1, :]     # (1, 128)
        z1_b = wb_ref[R_Z1_B:R_Z1_B + 1, :]
        w1zu_b = wb_ref[R_W1ZU_B:R_W1ZU_B + 1, :]
        z2_b = wb_ref[R_Z2_B:R_Z2_B + 1, :]

        # Hoisted lane-broadcast of x (JAX does not CSE broadcast_in_dim).
        xb = jnp.broadcast_to(x, (tb, HU_P))             # (TB, 16)

        # u path: in_features == 1 -> broadcast FMA on the VPU, no MXU.
        u1 = relu(xb * xu1_w + xu1_b)                    # (TB, 16); lanes 10..15 = 0
        g0 = xb * w0yu_w + w0yu_b                        # (TB, 16)  == w0yu(x)

        # z1 = relu((y*w0yu(x)) @ w0y^T + x @ w0u^T + (b0y + b0u))
        #   K=16 matmul; the rank-1 w0u(x) term is a VPU broadcast-FMA.
        z1 = relu(dot(y * g0, w0y_w) + x * w0u_row + z1_b)   # (TB,128); lanes>=100 = 0

        # gates
        zu = relu(dot(u1, w1zu_w) + w1zu_b)              # (TB, 128) = relu(w1zu(u1))
        g1 = dot(u1, w1yu_w) + w1yu_b                    # (TB, 16)  = w1yu(u1)
        # TODO(synk): g1 could be fused into the w1zu matmul (review item #7),
        # but slicing it back out of lanes 100..115 would relayout on the
        # vector-extended slots; kept as its own tiny matmul.

        # z2 = relu(w1z(z1*zu) + w1y(y*g1) + w1u(u1)) -- three concat-free dots.
        z2 = relu(dot(z1 * zu, w1z_w) + dot(y * g1, w1y_w) + dot(u1, w1u_w)
                  + z2_b)                                # (TB, 128)

        # output = NonNegativeLinear(z2): lane-dense (1, TB) MXU contraction
        # (A @ B^T) -> dense stores, no per-row XLU reduce.
        o8 = jax.lax.dot_general(out_w8.astype(cd), z2.astype(cd),
                                 dimension_numbers=_TRANS_B,
                                 preferred_element_type=jnp.float32)   # (8, TB)
        o_ref[...] = o8[0:1, :] + outb_ref[0, 0]

    return kernel


# =============================================================================
# Wrapper
# =============================================================================
def picnn_forward(x, y, packed, *, block_b=1024, compute_dtype=jnp.bfloat16):
    wide, narrow, out_b = packed
    x = x.astype(jnp.float32)
    y = y.astype(jnp.float32)
    B = x.shape[0]

    blk = max(128, _round_up(int(block_b), 128))
    # Cap TB so the grid has >= 2 steps whenever B allows: on v7x the
    # "parallel" batch axis only shards across the two TensorCores if there is
    # more than one grid step (no effect on single-TC v5e/v6e).
    half = max(128, _round_up(-(-B // 2), 128))
    TB = min(blk, half)
    Bp = _round_up(B, TB)
    if Bp != B:
        x = jnp.pad(x, ((0, Bp - B), (0, 0)))
        y = jnp.pad(y, ((0, Bp - B), (0, 0)))

    out = pl.pallas_call(
        make_picnn_kernel(compute_dtype),
        out_shape=jax.ShapeDtypeStruct((1, Bp), jnp.float32),
        grid=(Bp // TB,),
        in_specs=[
            pl.BlockSpec((TB, 1), lambda i: (i, 0)),              # x  (pipelined)
            pl.BlockSpec((TB, NI), lambda i: (i, 0)),             # y  (pipelined)
            pl.BlockSpec((ROWS_WIDE, HZ_P), lambda i: (0, 0)),    # params: resident
            pl.BlockSpec((ROWS_NARROW, HU_P), lambda i: (0, 0)),  # params: resident
            pl.BlockSpec(memory_space=pltpu.MemorySpace.SMEM),    # output bias scalar
        ],
        out_specs=pl.BlockSpec((1, TB), lambda i: (0, i)),        # lane-dense output
        compiler_params=pltpu.CompilerParams(
            dimension_semantics=("parallel",)),
    )(x, y, wide, narrow, out_b)
    return out[0, :B].reshape(B, 1)


# =============================================================================
# Parameter construction (PyTorch-equivalent init) and packing
# =============================================================================
def init_linear(key, in_f, out_f):
    """nn.Linear default init: U(-1/sqrt(in), 1/sqrt(in)); torch layout (out, in)."""
    kw, kb = jax.random.split(key)
    bound = 1.0 / math.sqrt(in_f)
    w = jax.random.uniform(kw, (out_f, in_f), jnp.float32, -bound, bound)
    b = jax.random.uniform(kb, (out_f,), jnp.float32, -bound, bound)
    return w, b


def make_raw_params(key):
    defs = [
        ("x_u1", 1, HU, False),
        ("w0yu", 1, NI, False),
        ("w0y", NI, HZ, False),
        ("w0u", 1, HZ, False),
        ("w1zu", HU, HZ, False),
        ("w1yu", HU, NI, False),
        ("w1z", HZ, HZ, True),     # NonNegativeLinear -> clamp W >= 0
        ("w1y", NI, HZ, False),
        ("w1u", HU, HZ, False),
        ("output", HZ, 1, True),   # NonNegativeLinear -> clamp W >= 0
    ]
    raw = {}
    for name, in_f, out_f, clamp in defs:
        key, sub = jax.random.split(key)
        w, b = init_linear(sub, in_f, out_f)
        if clamp:
            w = jnp.maximum(w, 0.0)    # same effect as weight.data.clamp_(min=0)
        raw[name] = (w, b)
    return raw


def pack_params(raw):
    """Pack all layers into one wide (x128) and one narrow (x16) buffer + scalar."""
    wide = jnp.zeros((ROWS_WIDE, HZ_P), jnp.float32)
    narrow = jnp.zeros((ROWS_NARROW, HU_P), jnp.float32)

    w_xu1, b_xu1 = raw["x_u1"]
    w_w0yu, b_w0yu = raw["w0yu"]
    w_w0y, b_w0y = raw["w0y"]
    w_w0u, b_w0u = raw["w0u"]
    w_w1zu, b_w1zu = raw["w1zu"]
    w_w1yu, b_w1yu = raw["w1yu"]
    w_w1z, b_w1z = raw["w1z"]
    w_w1y, b_w1y = raw["w1y"]
    w_w1u, b_w1u = raw["w1u"]
    w_out, b_out = raw["output"]

    # -- wide buffer --
    wide = wide.at[R_W0Y:R_W0Y + NI, :HZ].set(w_w0y.T)
    wide = wide.at[R_W1ZU:R_W1ZU + HU, :HZ].set(w_w1zu.T)
    wide = wide.at[R_W1Z:R_W1Z + HZ, :HZ].set(w_w1z.T)
    wide = wide.at[R_W1Y:R_W1Y + NI, :HZ].set(w_w1y.T)
    wide = wide.at[R_W1U:R_W1U + HU, :HZ].set(w_w1u.T)
    wide = wide.at[R_OUT_W, :HZ].set(w_out[0])
    wide = wide.at[R_W0U_ROW, :HZ].set(w_w0u[:, 0])
    wide = wide.at[R_Z1_B, :HZ].set(b_w0y + b_w0u)
    wide = wide.at[R_W1ZU_B, :HZ].set(b_w1zu)
    wide = wide.at[R_Z2_B, :HZ].set(b_w1z + b_w1y + b_w1u)

    # -- narrow buffer --
    narrow = narrow.at[R_XU1_W, :HU].set(w_xu1[:, 0])
    narrow = narrow.at[R_XU1_B, :HU].set(b_xu1)
    narrow = narrow.at[R_W0YU_W, :NI].set(w_w0yu[:, 0])
    narrow = narrow.at[R_W0YU_B, :NI].set(b_w0yu)
    narrow = narrow.at[R_W1YU_W:R_W1YU_W + HU, :NI].set(w_w1yu.T)
    narrow = narrow.at[R_W1YU_B, :NI].set(b_w1yu)

    out_b = b_out.reshape(1, 1).astype(jnp.float32)
    return wide, narrow, out_b


# =============================================================================
# Pure-JAX reference (matches the PyTorch returned value)
# =============================================================================
def reference_forward(x, y, raw):
    relu = lambda a: jnp.maximum(a, 0.0)
    lin = lambda a, wb: a @ wb[0].T + wb[1]
    u1 = relu(lin(x, raw["x_u1"]))
    z1 = relu(lin(y * lin(x, raw["w0yu"]), raw["w0y"]) + lin(x, raw["w0u"]))
    z2 = relu(lin(z1 * relu(lin(u1, raw["w1zu"])), raw["w1z"])
              + lin(y * lin(u1, raw["w1yu"]), raw["w1y"])
              + lin(u1, raw["w1u"]))
    return lin(z2, raw["output"])


if __name__ == "__main__":
    key = jax.random.PRNGKey(0)
    kp, kx, ky, kx2, ky2 = jax.random.split(key, 5)

    raw = make_raw_params(kp)
    packed = pack_params(raw)

    # --- check 1: small batch, f32 MXU path, tight tolerance ---
    B = 8
    x = jax.random.normal(kx, (B, 1), jnp.float32)
    y = jax.random.normal(ky, (B, NI), jnp.float32)
    ref = reference_forward(x, y, raw)
    out = jax.block_until_ready(
        picnn_forward(x, y, packed, compute_dtype=jnp.float32))
    assert out.shape == (B, 1)
    assert jnp.allclose(out, ref, atol=1e-4, rtol=1e-4), (out, ref)

    # --- check 2: multi-step grid (batch padding + pipelining), f32 path ---
    B2 = 300
    x2 = jax.random.normal(kx2, (B2, 1), jnp.float32)
    y2 = jax.random.normal(ky2, (B2, NI), jnp.float32)
    ref2 = reference_forward(x2, y2, raw)
    out2 = jax.block_until_ready(
        picnn_forward(x2, y2, packed, compute_dtype=jnp.float32))
    assert out2.shape == (B2, 1)
    assert jnp.allclose(out2, ref2, atol=1e-4, rtol=1e-4)

    # --- check 3: bf16 MXU-operand path (perf default), loose tolerance ---
    out_bf16 = jax.block_until_ready(
        picnn_forward(x, y, packed, compute_dtype=jnp.bfloat16))
    assert out_bf16.shape == (B, 1)
    assert jnp.allclose(out_bf16, ref, atol=1e-1, rtol=5e-2), (out_bf16, ref)

    print("KERNEL_OK")
</pallas_src>

<mosaic_0001>
module attributes {stable_mosaic.version = 11 : i64} {
  func.func @kernel(%arg0: i32, %arg1: memref<128x1xf32, #tpu.memory_space<vmem>>, %arg2: memref<128x16xf32, #tpu.memory_space<vmem>>, %arg3: memref<208x128xf32, #tpu.memory_space<vmem>>, %arg4: memref<24x16xf32, #tpu.memory_space<vmem>>, %arg5: memref<1x1xf32, #tpu.memory_space<smem>>, %arg6: memref<1x128xf32, #tpu.memory_space<vmem>>) attributes {dimension_semantics = [#tpu.dimension_semantics<parallel>], iteration_bounds = array<i64: 1>, scalar_prefetch = 0 : i64, scratch_operands = 0 : i64, tpu.core_type = #tpu.core_type<tc>, window_params = [{transform_indices = @transform_0, window_bounds = array<i64: 128, 1>}, {transform_indices = @transform_1, window_bounds = array<i64: 128, 16>}, {pipeline_mode = #tpu.pipeline_mode<synchronous>, transform_indices = @transform_2, window_bounds = array<i64: 208, 128>}, {pipeline_mode = #tpu.pipeline_mode<synchronous>, transform_indices = @transform_3, window_bounds = array<i64: 24, 16>}, {transform_indices = @transform_4, window_bounds = array<i64: 1, 1>}, {transform_indices = @transform_5, window_bounds = array<i64: 1, 128>}]} {
    %c0 = arith.constant 0 : index
    %c0_0 = arith.constant 0 : index
    %0 = vector.load %arg1[%c0, %c0_0] : memref<128x1xf32, #tpu.memory_space<vmem>>, vector<128x1xf32>
    %c0_1 = arith.constant 0 : index
    %c0_2 = arith.constant 0 : index
    %1 = vector.load %arg2[%c0_1, %c0_2] : memref<128x16xf32, #tpu.memory_space<vmem>>, vector<128x16xf32>
    %c0_3 = arith.constant 0 : index
    %c0_4 = arith.constant 0 : index
    %2 = vector.load %arg4[%c0_3, %c0_4] : memref<24x16xf32, #tpu.memory_space<vmem>>, vector<1x16xf32>
    %c1 = arith.constant 1 : index
    %c0_5 = arith.constant 0 : index
    %3 = vector.load %arg4[%c1, %c0_5] : memref<24x16xf32, #tpu.memory_space<vmem>>, vector<1x16xf32>
    %c2 = arith.constant 2 : index
    %c0_6 = arith.constant 0 : index
    %4 = vector.load %arg4[%c2, %c0_6] : memref<24x16xf32, #tpu.memory_space<vmem>>, vector<1x16xf32>
    %c3 = arith.constant 3 : index
    %c0_7 = arith.constant 0 : index
    %5 = vector.load %arg4[%c3, %c0_7] : memref<24x16xf32, #tpu.memory_space<vmem>>, vector<1x16xf32>
    %c8 = arith.constant 8 : index
    %c0_8 = arith.constant 0 : index
    %6 = vector.load %arg4[%c8, %c0_8] : memref<24x16xf32, #tpu.memory_space<vmem>>, vector<16x16xf32>
    %c4 = arith.constant 4 : index
    %c0_9 = arith.constant 0 : index
    %7 = vector.load %arg4[%c4, %c0_9] : memref<24x16xf32, #tpu.memory_space<vmem>>, vector<1x16xf32>
    %c0_10 = arith.constant 0 : index
    %c0_11 = arith.constant 0 : index
    %8 = vector.load %arg3[%c0_10, %c0_11] : memref<208x128xf32, #tpu.memory_space<vmem>>, vector<16x128xf32>
    %c16 = arith.constant 16 : index
    %c0_12 = arith.constant 0 : index
    %9 = vector.load %arg3[%c16, %c0_12] : memref<208x128xf32, #tpu.memory_space<vmem>>, vector<16x128xf32>
    %c32 = arith.constant 32 : index
    %c0_13 = arith.constant 0 : index
    %10 = vector.load %arg3[%c32, %c0_13] : memref<208x128xf32, #tpu.memory_space<vmem>>, vector<128x128xf32>
    %c160 = arith.constant 160 : index
    %c0_14 = arith.constant 0 : index
    %11 = vector.load %arg3[%c160, %c0_14] : memref<208x128xf32, #tpu.memory_space<vmem>>, vector<16x128xf32>
    %c176 = arith.constant 176 : index
    %c0_15 = arith.constant 0 : index
    %12 = vector.load %arg3[%c176, %c0_15] : memref<208x128xf32, #tpu.memory_space<vmem>>, vector<16x128xf32>
    %c192 = arith.constant 192 : index
    %c0_16 = arith.constant 0 : index
    %13 = vector.load %arg3[%c192, %c0_16] : memref<208x128xf32, #tpu.memory_space<vmem>>, vector<8x128xf32>
    %c200 = arith.constant 200 : index
    %c0_17 = arith.constant 0 : index
    %14 = vector.load %arg3[%c200, %c0_17] : memref<208x128xf32, #tpu.memory_space<vmem>>, vector<1x128xf32>
    %c201 = arith.constant 201 : index
    %c0_18 = arith.constant 0 : index
    %15 = vector.load %arg3[%c201, %c0_18] : memref<208x128xf32, #tpu.memory_space<vmem>>, vector<1x128xf32>
    %c202 = arith.constant 202 : index
    %c0_19 = arith.constant 0 : index
    %16 = vector.load %arg3[%c202, %c0_19] : memref<208x128xf32, #tpu.memory_space<vmem>>, vector<1x128xf32>
    %c203 = arith.constant 203 : index
    %c0_20 = arith.constant 0 : index
    %17 = vector.load %arg3[%c203, %c0_20] : memref<208x128xf32, #tpu.memory_space<vmem>>, vector<1x128xf32>
    %18 = vector.shape_cast %0 : vector<128x1xf32> to vector<128x1xf32>
    %19 = vector.broadcast %18 : vector<128x1xf32> to vector<128x16xf32>
    %20 = vector.broadcast %2 : vector<1x16xf32> to vector<128x16xf32>
    %21 = arith.mulf %19, %20 : vector<128x16xf32>
    %22 = vector.broadcast %3 : vector<1x16xf32> to vector<128x16xf32>
    %23 = arith.addf %21, %22 : vector<128x16xf32>
    %cst = arith.constant 0.000000e+00 : f32
    %24 = vector.broadcast %cst : f32 to vector<128x16xf32>
    %25 = arith.maximumf %23, %24 : vector<128x16xf32>
    %26 = vector.broadcast %4 : vector<1x16xf32> to vector<128x16xf32>
    %27 = arith.mulf %19, %26 : vector<128x16xf32>
    %28 = vector.broadcast %5 : vector<1x16xf32> to vector<128x16xf32>
    %29 = arith.addf %27, %28 : vector<128x16xf32>
    %30 = arith.mulf %1, %29 : vector<128x16xf32>
    %cst_21 = arith.constant dense<0.000000e+00> : vector<128x128xf32>
    %31 = tpu.matmul %30, %8, %cst_21 {dimension_numbers = #tpu.dot_dimension_numbers<[1], [0], [0], [1], [0, 0, 1, 1], [], []>} : vector<128x16xf32>, vector<16x128xf32>, vector<128x128xf32> -> vector<128x128xf32>
    %32 = vector.broadcast %0 : vector<128x1xf32> to vector<128x128xf32>
    %33 = vector.broadcast %14 : vector<1x128xf32> to vector<128x128xf32>
    %34 = arith.mulf %32, %33 : vector<128x128xf32>
    %35 = arith.addf %31, %34 : vector<128x128xf32>
    %36 = vector.broadcast %15 : vector<1x128xf32> to vector<128x128xf32>
    %37 = arith.addf %35, %36 : vector<128x128xf32>
    %cst_22 = arith.constant 0.000000e+00 : f32
    %38 = vector.broadcast %cst_22 : f32 to vector<128x128xf32>
    %39 = arith.maximumf %37, %38 : vector<128x128xf32>
    %cst_23 = arith.constant dense<0.000000e+00> : vector<128x128xf32>
    %40 = tpu.matmul %25, %9, %cst_23 {dimension_numbers = #tpu.dot_dimension_numbers<[1], [0], [0], [1], [0, 0, 1, 1], [], []>} : vector<128x16xf32>, vector<16x128xf32>, vector<128x128xf32> -> vector<128x128xf32>
    %41 = vector.broadcast %16 : vector<1x128xf32> to vector<128x128xf32>
    %42 = arith.addf %40, %41 : vector<128x128xf32>
    %cst_24 = arith.constant 0.000000e+00 : f32
    %43 = vector.broadcast %cst_24 : f32 to vector<128x128xf32>
    %44 = arith.maximumf %42, %43 : vector<128x128xf32>
    %cst_25 = arith.constant dense<0.000000e+00> : vector<128x16xf32>
    %45 = tpu.matmul %25, %6, %cst_25 {dimension_numbers = #tpu.dot_dimension_numbers<[1], [0], [0], [1], [0, 0, 1, 1], [], []>} : vector<128x16xf32>, vector<16x16xf32>, vector<128x16xf32> -> vector<128x16xf32>
    %46 = vector.broadcast %7 : vector<1x16xf32> to vector<128x16xf32>
    %47 = arith.addf %45, %46 : vector<128x16xf32>
    %48 = arith.mulf %39, %44 : vector<128x128xf32>
    %cst_26 = arith.constant dense<0.000000e+00> : vector<128x128xf32>
    %49 = tpu.matmul %48, %10, %cst_26 {dimension_numbers = #tpu.dot_dimension_numbers<[1], [0], [0], [1], [0, 0, 1, 1], [], []>} : vector<128x128xf32>, vector<128x128xf32>, vector<128x128xf32> -> vector<128x128xf32>
    %50 = arith.mulf %1, %47 : vector<128x16xf32>
    %cst_27 = arith.constant dense<0.000000e+00> : vector<128x128xf32>
    %51 = tpu.matmul %50, %11, %cst_27 {dimension_numbers = #tpu.dot_dimension_numbers<[1], [0], [0], [1], [0, 0, 1, 1], [], []>} : vector<128x16xf32>, vector<16x128xf32>, vector<128x128xf32> -> vector<128x128xf32>
    %52 = arith.addf %49, %51 : vector<128x128xf32>
    %cst_28 = arith.constant dense<0.000000e+00> : vector<128x128xf32>
    %53 = tpu.matmul %25, %12, %cst_28 {dimension_numbers = #tpu.dot_dimension_numbers<[1], [0], [0], [1], [0, 0, 1, 1], [], []>} : vector<128x16xf32>, vector<16x128xf32>, vector<128x128xf32> -> vector<128x128xf32>
    %54 = arith.addf %52, %53 : vector<128x128xf32>
    %55 = vector.broadcast %17 : vector<1x128xf32> to vector<128x128xf32>
    %56 = arith.addf %54, %55 : vector<128x128xf32>
    %cst_29 = arith.constant 0.000000e+00 : f32
    %57 = vector.broadcast %cst_29 : f32 to vector<128x128xf32>
    %58 = arith.maximumf %56, %57 : vector<128x128xf32>
    %cst_30 = arith.constant dense<0.000000e+00> : vector<8x128xf32>
    %59 = tpu.matmul %13, %58, %cst_30 {dimension_numbers = #tpu.dot_dimension_numbers<[1], [1], [0], [0], [0, 0, 1, 0], [], []>} : vector<8x128xf32>, vector<128x128xf32>, vector<8x128xf32> -> vector<8x128xf32>
    %60 = vector.extract_strided_slice %59 {offsets = [0, 0], sizes = [1, 128], strides = [1, 1]} : vector<8x128xf32> to vector<1x128xf32>
    %c0_31 = arith.constant 0 : index
    %c0_32 = arith.constant 0 : index
    %61 = memref.load %arg5[%c0_31, %c0_32] : memref<1x1xf32, #tpu.memory_space<smem>>
    %62 = vector.broadcast %61 : f32 to vector<1x128xf32>
    %63 = arith.addf %60, %62 : vector<1x128xf32>
    %c0_33 = arith.constant 0 : index
    %c0_34 = arith.constant 0 : index
    %64 = vector.load %arg6[%c0_33, %c0_34] : memref<1x128xf32, #tpu.memory_space<vmem>>, vector<1x128xf32>
    tpu.vector_store %arg6[%c0_33, %c0_34], %63 {strides = array<i32>} : memref<1x128xf32, #tpu.memory_space<vmem>>, vector<1x128xf32>,
    return
  }
  func.func @transform_0(%arg0: i32) -> (i32, i32) {
    %c0_i32 = arith.constant 0 : i32
    %c0_i32_0 = arith.constant 0 : i32
    return %arg0, %c0_i32 : i32, i32
  }
  func.func @transform_1(%arg0: i32) -> (i32, i32) {
    %c0_i32 = arith.constant 0 : i32
    %c0_i32_0 = arith.constant 0 : i32
    return %arg0, %c0_i32 : i32, i32
  }
  func.func @transform_2(%arg0: i32) -> (i32, i32) {
    %c0_i32 = arith.constant 0 : i32
    %c0_i32_0 = arith.constant 0 : i32
    %c0_i32_1 = arith.constant 0 : i32
    return %c0_i32, %c0_i32_0 : i32, i32
  }
  func.func @transform_3(%arg0: i32) -> (i32, i32) {
    %c0_i32 = arith.constant 0 : i32
    %c0_i32_0 = arith.constant 0 : i32
    %c0_i32_1 = arith.constant 0 : i32
    return %c0_i32, %c0_i32_0 : i32, i32
  }
  func.func @transform_4(%arg0: i32) -> (i32, i32) {
    %c0_i32 = arith.constant 0 : i32
    %c0_i32_0 = arith.constant 0 : i32
    %c0_i32_1 = arith.constant 0 : i32
    return %c0_i32, %c0_i32_0 : i32, i32
  }
  func.func @transform_5(%arg0: i32) -> (i32, i32) {
    %c0_i32 = arith.constant 0 : i32
    %c0_i32_0 = arith.constant 0 : i32
    return %c0_i32, %arg0 : i32, i32
  }
}

</mosaic_0001>

<llo_original>
// kernel: tpu_custom_call.1
$region0: #{tpu_custom_call.1}
  #allocation0 [shape = 'u32[]', space=smem, size = 0x4, offset = 0x4, fixed_abs, tag = 'smem constant byte address 0x4 - core index']
  #allocation1 [shape = 'u32[144,128]{1,0:T(1,128)}', space=vmem, size = 0x12000, scoped, tag = 'internal scratch']
  #allocation2 [shape = 'f32[1,1]{1,0:T(1,128)S(6)}', space=smem, size = 0x200, scoped, tag = 'scoped memory for tpu_custom_call.1']
  %s0 = inlined_call_operand.vmem [shape: f32[128,1], index: 0, kind: input, shape index: {}]
  %s1 = inlined_call_operand.vmem [shape: f32[128,16], index: 1, kind: input, shape index: {}]
  %s2 = inlined_call_operand.vmem [shape: f32[208,128], index: 2, kind: input, shape index: {}]
  %s3 = inlined_call_operand.vmem [shape: f32[24,16], index: 3, kind: input, shape index: {}]
  %s4 = inlined_call_operand.<no memory space> [shape: f32[1,1], index: 4, kind: input, shape index: {}]
  %s5 = inlined_call_operand.hbm [shape: f32[1,128], index: 5, kind: output, shape index: {}]
  %s6 = sld [smem:[#allocation0]]
  $region30: #{tpu_custom_call.1} parent=0
    _
  %s8 = ssub.s32 1, %s6
  %s9 = scalar_select 0, %s8, %s6
  %10 = sst [smem:[#allocation2]] %s4
  $region1: #{tpu_custom_call.1} parent=0
    #allocation3 [shape = 'u8[512]{0}', space=vmem, size = 0x400, scoped, tag = 'output window, operand 0, single buffered']
    #allocation4 [shape = 's32[1]{0}', space=sflag, size = 0x4, scoped, tag = 'scoped memory for tpu_custom_call.1']
    %11 = vsyncpa [#allocation4], 0
    // Predicated region
    $region2: #{tpu_custom_call.1} parent=1 // pred_check
      _
    $region3: #{tpu_custom_call.1} parent=1 // pred_check_branch
      %13 = sbr.rel (0) target = $region5
    $region4: #{tpu_custom_call.1} parent=1 // pred_region
      _
    $region5: #{tpu_custom_call.1} parent=1 // pred_fallthru
      _
    // Predicated region
    $region6: #{tpu_custom_call.1} parent=1 // pred_check
      _
    $region7: #{tpu_custom_call.1} parent=1 // pred_check_branch
      %15 = sbr.rel (0) target = $region9
    $region8: #{tpu_custom_call.1} parent=1 // pred_region
      _
    $region9: #{tpu_custom_call.1} parent=1 // pred_fallthru
      _
    // Predicated region
    $region10: #{tpu_custom_call.1} parent=1 // pred_check
      _
    $region11: #{tpu_custom_call.1} parent=1 // pred_check_branch
      %17 = sbr.rel (0) target = $region13
    $region12: #{tpu_custom_call.1} parent=1 // pred_region
      _
    $region13: #{tpu_custom_call.1} parent=1 // pred_fallthru
      _
    // Predicated region
    $region14: #{tpu_custom_call.1} parent=1 // pred_check
      _
    $region15: #{tpu_custom_call.1} parent=1 // pred_check_branch
      %19 = sbr.rel (0) target = $region17
    $region16: #{tpu_custom_call.1} parent=1 // pred_region
      _
    $region17: #{tpu_custom_call.1} parent=1 // pred_fallthru
      _
    // Predicated region
    $region18: #{tpu_custom_call.1} parent=1 // pred_check
      _
    $region19: #{tpu_custom_call.1} parent=1 // pred_check_branch
      %21 = sbr.rel (0) target = $region21
    $region20: #{tpu_custom_call.1} parent=1 // pred_region
      _
    $region21: #{tpu_custom_call.1} parent=1 // pred_fallthru
      _
    %v22 = vld [vmem:[%s0] sm:$0xff]
    %v23 = vld [vmem:[%s0 + $0x8] sm:$0xff]
    %v24 = vld [vmem:[%s0 + $0x10] sm:$0xff]
    %v25 = vld [vmem:[%s0 + $0x18] sm:$0xff]
    %v26 = vld [vmem:[%s0 + $0x20] sm:$0xff]
    %v27 = vld [vmem:[%s0 + $0x28] sm:$0xff]
    %v28 = vld [vmem:[%s0 + $0x30] sm:$0xff]
    %v29 = vld [vmem:[%s0 + $0x38] sm:$0xff]
    %v30 = vld [vmem:[%s0 + $0x40] sm:$0xff]
    %v31 = vld [vmem:[%s0 + $0x48] sm:$0xff]
    %v32 = vld [vmem:[%s0 + $0x50] sm:$0xff]
    %v33 = vld [vmem:[%s0 + $0x58] sm:$0xff]
    %v34 = vld [vmem:[%s0 + $0x60] sm:$0xff]
    %v35 = vld [vmem:[%s0 + $0x68] sm:$0xff]
    %v36 = vld [vmem:[%s0 + $0x70] sm:$0xff]
    %v37 = vld [vmem:[%s0 + $0x78] sm:$0xff]
    %v38 = vld [vmem:[%s1] sm:$0xff]
    %v39 = vld [vmem:[%s1 + $0x8] sm:$0xff]
    %v40 = vld [vmem:[%s1 + $0x10] sm:$0xff]
    %v41 = vld [vmem:[%s1 + $0x18] sm:$0xff]
    %v42 = vld [vmem:[%s1 + $0x20] sm:$0xff]
    %v43 = vld [vmem:[%s1 + $0x28] sm:$0xff]
    %v44 = vld [vmem:[%s1 + $0x30] sm:$0xff]
    %v45 = vld [vmem:[%s1 + $0x38] sm:$0xff]
    %v46 = vld [vmem:[%s1 + $0x40] sm:$0xff]
    %v47 = vld [vmem:[%s1 + $0x48] sm:$0xff]
    %v48 = vld [vmem:[%s1 + $0x50] sm:$0xff]
    %v49 = vld [vmem:[%s1 + $0x58] sm:$0xff]
    %v50 = vld [vmem:[%s1 + $0x60] sm:$0xff]
    %v51 = vld [vmem:[%s1 + $0x68] sm:$0xff]
    %v52 = vld [vmem:[%s1 + $0x70] sm:$0xff]
    %v53 = vld [vmem:[%s1 + $0x78] sm:$0xff]
    %v54 = vld [vmem:[%s3] sm:$0x1]
    %v55 = vld [vmem:[%s3 + $0x1] sm:$0x1]
    %v56 = vld [vmem:[%s3 + $0x2] sm:$0x1]
    %v57 = vld [vmem:[%s3 + $0x3] sm:$0x1]
    %v58 = vld [vmem:[%s3 + $0x8] sm:$0xff]
    %v59 = vld [vmem:[%s3 + $0x10] sm:$0xff]
    %v60 = vld [vmem:[%s3 + $0x4] sm:$0x1]
    %v61 = vld [vmem:[%s2] sm:$0xff]
    %v62 = vld [vmem:[%s2 + $0x8] sm:$0xff]
    %v63 = vld [vmem:[%s2 + $0x10] sm:$0xff]
    %v64 = vld [vmem:[%s2 + $0x18] sm:$0xff]
    %v65 = vld [vmem:[%s2 + $0x20] sm:$0xff]
    %v66 = vld [vmem:[%s2 + $0x28] sm:$0xff]
    %v67 = vld [vmem:[%s2 + $0x30] sm:$0xff]
    %v68 = vld [vmem:[%s2 + $0x38] sm:$0xff]
    %v69 = vld [vmem:[%s2 + $0x40] sm:$0xff]
    %v70 = vld [vmem:[%s2 + $0x48] sm:$0xff]
    %v71 = vld [vmem:[%s2 + $0x50] sm:$0xff]
    %v72 = vld [vmem:[%s2 + $0x58] sm:$0xff]
    %v73 = vld [vmem:[%s2 + $0x60] sm:$0xff]
    %v74 = vld [vmem:[%s2 + $0x68] sm:$0xff]
    %v75 = vld [vmem:[%s2 + $0x70] sm:$0xff]
    %v76 = vld [vmem:[%s2 + $0x78] sm:$0xff]
    %v77 = vld [vmem:[%s2 + $0x80] sm:$0xff]
    %v78 = vld [vmem:[%s2 + $0x88] sm:$0xff]
    %v79 = vld [vmem:[%s2 + $0x90] sm:$0xff]
    %v80 = vld [vmem:[%s2 + $0x98] sm:$0xff]
    %v81 = vld [vmem:[%s2 + $0xa0] sm:$0xff]
    %v82 = vld [vmem:[%s2 + $0xa8] sm:$0xff]
    %v83 = vld [vmem:[%s2 + $0xb0] sm:$0xff]
    %v84 = vld [vmem:[%s2 + $0xb8] sm:$0xff]
    %v85 = vld [vmem:[%s2 + $0xc0] sm:$0xff]
    %v86 = vld [vmem:[%s2 + $0xc8] sm:$0x1]
    %v87 = vld [vmem:[%s2 + $0xc9] sm:$0x1]
    %v88 = vld [vmem:[%s2 + $0xca] sm:$0x1]
    %v89 = vld [vmem:[%s2 + $0xcb] sm:$0x1]
    %91 = vset.pattern.permute.xlu0 0
    %92 = vperm.xlu0 %91, %v22
    %v93 = vpop.permute.xlu0 %92
    %96 = vset.pattern.permute.xlu0 0
    %97 = vperm.xlu0 %96, %v23
    %v98 = vpop.permute.xlu0 %97
    %101 = vset.pattern.permute.xlu0 0
    %102 = vperm.xlu0 %101, %v24
    %v103 = vpop.permute.xlu0 %102
    %106 = vset.pattern.permute.xlu0 0
    %107 = vperm.xlu0 %106, %v25
    %v108 = vpop.permute.xlu0 %107
    %111 = vset.pattern.permute.xlu0 0
    %112 = vperm.xlu0 %111, %v26
    %v113 = vpop.permute.xlu0 %112
    %116 = vset.pattern.permute.xlu0 0
    %117 = vperm.xlu0 %116, %v27
    %v118 = vpop.permute.xlu0 %117
    %121 = vset.pattern.permute.xlu0 0
    %122 = vperm.xlu0 %121, %v28
    %v123 = vpop.permute.xlu0 %122
    %126 = vset.pattern.permute.xlu0 0
    %127 = vperm.xlu0 %126, %v29
    %v128 = vpop.permute.xlu0 %127
    %131 = vset.pattern.permute.xlu0 0
    %132 = vperm.xlu0 %131, %v30
    %v133 = vpop.permute.xlu0 %132
    %136 = vset.pattern.permute.xlu0 0
    %137 = vperm.xlu0 %136, %v31
    %v138 = vpop.permute.xlu0 %137
    %141 = vset.pattern.permute.xlu0 0
    %142 = vperm.xlu0 %141, %v32
    %v143 = vpop.permute.xlu0 %142
    %146 = vset.pattern.permute.xlu0 0
    %147 = vperm.xlu0 %146, %v33
    %v148 = vpop.permute.xlu0 %147
    %151 = vset.pattern.permute.xlu0 0
    %152 = vperm.xlu0 %151, %v34
    %v153 = vpop.permute.xlu0 %152
    %156 = vset.pattern.permute.xlu0 0
    %157 = vperm.xlu0 %156, %v35
    %v158 = vpop.permute.xlu0 %157
    %161 = vset.pattern.permute.xlu0 0
    %162 = vperm.xlu0 %161, %v36
    %v163 = vpop.permute.xlu0 %162
    %166 = vset.pattern.permute.xlu0 0
    %167 = vperm.xlu0 %166, %v37
    %v168 = vpop.permute.xlu0 %167
    %v170 = vlaneseq
    %v171 = vshrl.u32 %v170, 7
    %v172 = vsub.s32 0, %v171
    %v173 = vrot.slane %v54, %v172
    %v174 = vmul.f32 %v93, %v173
    %v175 = vmul.f32 %v98, %v173
    %v176 = vmul.f32 %v103, %v173
    %v177 = vmul.f32 %v108, %v173
    %v178 = vmul.f32 %v113, %v173
    %v179 = vmul.f32 %v118, %v173
    %v180 = vmul.f32 %v123, %v173
    %v181 = vmul.f32 %v128, %v173
    %v182 = vmul.f32 %v133, %v173
    %v183 = vmul.f32 %v138, %v173
    %v184 = vmul.f32 %v143, %v173
    %v185 = vmul.f32 %v148, %v173
    %v186 = vmul.f32 %v153, %v173
    %v187 = vmul.f32 %v158, %v173
    %v188 = vmul.f32 %v163, %v173
    %v189 = vmul.f32 %v168, %v173
    %v190 = vlaneseq
    %v191 = vshrl.u32 %v190, 7
    %v192 = vsub.s32 0, %v191
    %v193 = vrot.slane %v55, %v192
    %v194 = vadd.f32 %v174, %v193
    %v195 = vadd.f32 %v175, %v193
    %v196 = vadd.f32 %v176, %v193
    %v197 = vadd.f32 %v177, %v193
    %v198 = vadd.f32 %v178, %v193
    %v199 = vadd.f32 %v179, %v193
    %v200 = vadd.f32 %v180, %v193
    %v201 = vadd.f32 %v181, %v193
    %v202 = vadd.f32 %v182, %v193
    %v203 = vadd.f32 %v183, %v193
    %v204 = vadd.f32 %v184, %v193
    %v205 = vadd.f32 %v185, %v193
    %v206 = vadd.f32 %v186, %v193
    %v207 = vadd.f32 %v187, %v193
    %v208 = vadd.f32 %v188, %v193
    %v209 = vadd.f32 %v189, %v193
    %v210 = vmax.f32 %v194, 0.0
    %v211 = vmax.f32 %v195, 0.0
    %v212 = vmax.f32 %v196, 0.0
    %v213 = vmax.f32 %v197, 0.0
    %v214 = vmax.f32 %v198, 0.0
    %v215 = vmax.f32 %v199, 0.0
    %v216 = vmax.f32 %v200, 0.0
    %v217 = vmax.f32 %v201, 0.0
    %v218 = vmax.f32 %v202, 0.0
    %v219 = vmax.f32 %v203, 0.0
    %v220 = vmax.f32 %v204, 0.0
    %v221 = vmax.f32 %v205, 0.0
    %v222 = vmax.f32 %v206, 0.0
    %v223 = vmax.f32 %v207, 0.0
    %v224 = vmax.f32 %v208, 0.0
    %v225 = vmax.f32 %v209, 0.0
    %v226 = vlaneseq
    %v227 = vshrl.u32 %v226, 7
    %v228 = vsub.s32 0, %v227
    %v229 = vrot.slane %v56, %v228
    %v230 = vmul.f32 %v93, %v229
    %v231 = vmul.f32 %v98, %v229
    %v232 = vmul.f32 %v103, %v229
    %v233 = vmul.f32 %v108, %v229
    %v234 = vmul.f32 %v113, %v229
    %v235 = vmul.f32 %v118, %v229
    %v236 = vmul.f32 %v123, %v229
    %v237 = vmul.f32 %v128, %v229
    %v238 = vmul.f32 %v133, %v229
    %v239 = vmul.f32 %v138, %v229
    %v240 = vmul.f32 %v143, %v229
    %v241 = vmul.f32 %v148, %v229
    %v242 = vmul.f32 %v153, %v229
    %v243 = vmul.f32 %v158, %v229
    %v244 = vmul.f32 %v163, %v229
    %v245 = vmul.f32 %v168, %v229
    %v246 = vlaneseq
    %v247 = vshrl.u32 %v246, 7
    %v248 = vsub.s32 0, %v247
    %v249 = vrot.slane %v57, %v248
    %v250 = vadd.f32 %v230, %v249
    %v251 = vadd.f32 %v231, %v249
    %v252 = vadd.f32 %v232, %v249
    %v253 = vadd.f32 %v233, %v249
    %v254 = vadd.f32 %v234, %v249
    %v255 = vadd.f32 %v235, %v249
    %v256 = vadd.f32 %v236, %v249
    %v257 = vadd.f32 %v237, %v249
    %v258 = vadd.f32 %v238, %v249
    %v259 = vadd.f32 %v239, %v249
    %v260 = vadd.f32 %v240, %v249
    %v261 = vadd.f32 %v241, %v249
    %v262 = vadd.f32 %v242, %v249
    %v263 = vadd.f32 %v243, %v249
    %v264 = vadd.f32 %v244, %v249
    %v265 = vadd.f32 %v245, %v249
    %v266 = vmul.f32 %v38, %v250
    %v267 = vmul.f32 %v39, %v251
    %v268 = vmul.f32 %v40, %v252
    %v269 = vmul.f32 %v41, %v253
    %v270 = vmul.f32 %v42, %v254
    %v271 = vmul.f32 %v43, %v255
    %v272 = vmul.f32 %v44, %v256
    %v273 = vmul.f32 %v45, %v257
    %v274 = vmul.f32 %v46, %v258
    %v275 = vmul.f32 %v47, %v259
    %v276 = vmul.f32 %v48, %v260
    %v277 = vmul.f32 %v49, %v261
    %v278 = vmul.f32 %v50, %v262
    %v279 = vmul.f32 %v51, %v263
    %v280 = vmul.f32 %v52, %v264
    %v281 = vmul.f32 %v53, %v265
    %v282 = vlaneseq
    %v283 = vshrl.u32 %v282, 7
    %v284 = vsub.s32 0, %v283
    %v285 = vrot.slane %v86, %v284
    %v286 = vmul.f32 %v93, %v285
    %v287 = vmul.f32 %v98, %v285
    %v288 = vmul.f32 %v103, %v285
    %v289 = vmul.f32 %v108, %v285
    %v290 = vmul.f32 %v113, %v285
    %v291 = vmul.f32 %v118, %v285
    %v292 = vmul.f32 %v123, %v285
    %v293 = vmul.f32 %v128, %v285
    %v294 = vmul.f32 %v133, %v285
    %v295 = vmul.f32 %v138, %v285
    %v296 = vmul.f32 %v143, %v285
    %v297 = vmul.f32 %v148, %v285
    %v298 = vmul.f32 %v153, %v285
    %v299 = vmul.f32 %v158, %v285
    %v300 = vmul.f32 %v163, %v285
    %v301 = vmul.f32 %v168, %v285
    %vm302 = vcmask 130048
    %v304 = vsel %vm302, %v266, 0
    %v307 = vsel %vm302, %v267, 0
    %v310 = vsel %vm302, %v268, 0
    %v313 = vsel %vm302, %v269, 0
    %v316 = vsel %vm302, %v270, 0
    %v319 = vsel %vm302, %v271, 0
    %v322 = vsel %vm302, %v272, 0
    %v325 = vsel %vm302, %v273, 0
    %v328 = vsel %vm302, %v274, 0
    %v331 = vsel %vm302, %v275, 0
    %v334 = vsel %vm302, %v276, 0
    %v337 = vsel %vm302, %v277, 0
    %v340 = vsel %vm302, %v278, 0
    %v343 = vsel %vm302, %v279, 0
    %v346 = vsel %vm302, %v280, 0
    %v349 = vsel %vm302, %v281, 0
    %351 = vmatprep.subr.mxu0 0.0
    %352 = vmatpush1.msra.mxu0 %v61
    %353 = vmatprep.subr.mxu0 0.0
    %354 = vmatpush1.msra.mxu0 %v62
    %355 = vmatprep.subr.mxu0 0.0
    %356 = vmatpush1.msra.mxu0 0.0
    %357 = vmatprep.subr.mxu0 0.0
    %358 = vmatpush1.msra.mxu0 0.0
    %359 = vmatprep.subr.mxu0 0.0
    %360 = vmatpush1.msra.mxu0 0.0
    %361 = vmatprep.subr.mxu0 0.0
    %362 = vmatpush1.msra.mxu0 0.0
    %363 = vmatprep.subr.mxu0 0.0
    %364 = vmatpush1.msra.mxu0 0.0
    %365 = vmatprep.subr.mxu0 0.0
    %366 = vmatpush1.msra.mxu0 0.0
    %367 = vmatprep.subr.mxu0 0.0
    %368 = vmatpush1.msra.mxu0 0.0
    %369 = vmatprep.subr.mxu0 0.0
    %370 = vmatpush1.msra.mxu0 0.0
    %371 = vmatprep.subr.mxu0 0.0
    %372 = vmatpush1.msra.mxu0 0.0
    %373 = vmatprep.subr.mxu0 0.0
    %374 = vmatpush1.msra.mxu0 0.0
    %375 = vmatprep.subr.mxu0 0.0
    %376 = vmatpush1.msra.mxu0 0.0
    %377 = vmatprep.subr.mxu0 0.0
    %378 = vmatpush1.msra.mxu0 0.0
    %379 = vmatprep.subr.mxu0 0.0
    %380 = vmatpush1.msra.mxu0 0.0
    %381 = vmatprep.subr.mxu0 0.0
    %382 = vmatpush1.msra.mxu0 0.0
    %383 = vmatprep.subr.mxu0 0.0
    %384 = vmatpush1.msra.mxu0 0.0
    %385 = vmatprep.subr.mxu0 0.0
    %386 = vmatpush1.msra.mxu0 0.0
    %387 = vmatprep.subr.mxu0 0.0
    %388 = vmatpush1.msra.mxu0 0.0
    %389 = vmatprep.subr.mxu0 0.0
    %390 = vmatpush1.msra.mxu0 0.0
    %391 = vmatprep.subr.mxu0 0.0
    %392 = vmatpush1.msra.mxu0 0.0
    %393 = vmatprep.subr.mxu0 0.0
    %394 = vmatpush1.msra.mxu0 0.0
    %395 = vmatprep.subr.mxu0 0.0
    %396 = vmatpush1.msra.mxu0 0.0
    %397 = vmatprep.subr.mxu0 0.0
    %398 = vmatpush1.msra.mxu0 0.0
    %399 = vmatprep.subr.mxu0 0.0
    %400 = vmatpush1.msra.mxu0 0.0
    %401 = vmatprep.subr.mxu0 0.0
    %402 = vmatpush1.msra.mxu0 0.0
    %403 = vmatprep.subr.mxu0 0.0
    %404 = vmatpush1.msra.mxu0 0.0
    %405 = vmatprep.subr.mxu0 0.0
    %406 = vmatpush1.msra.mxu0 0.0
    %407 = vmatprep.subr.mxu0 0.0
    %408 = vmatpush1.msra.mxu0 0.0
    %409 = vmatprep.subr.mxu0 0.0
    %410 = vmatpush1.msra.mxu0 0.0
    %411 = vmatprep.subr.mxu0 0.0
    %412 = vmatpush1.msra.mxu0 0.0
    %413 = vmatprep.subr.mxu0 0.0
    %414 = vmatpush1.msra.mxu0 0.0
    %415 = vmatprep.mubr.f32.mxu0 0.0
    %416 = vmatmul.mubr.f32.gmra.mrb[0].mxu0 %v304
    %v417 = vpop.f32.mrb[0].mxu0
    %v418 = vadd.f32 %v286, %v417
    %v419 = vpop.f32.mrb[0].mxu0
    %420 = vmatprep.mubr.f32.mxu0 0.0
    %421 = vmatmul.mubr.f32.gmra.mrb[0].mxu0 %v307
    %v422 = vpop.f32.mrb[0].mxu0
    %v423 = vadd.f32 %v287, %v422
    %v424 = vpop.f32.mrb[0].mxu0
    %425 = vmatprep.mubr.f32.mxu0 0.0
    %426 = vmatmul.mubr.f32.gmra.mrb[0].mxu0 %v310
    %v427 = vpop.f32.mrb[0].mxu0
    %v428 = vadd.f32 %v288, %v427
    %v429 = vpop.f32.mrb[0].mxu0
    %430 = vmatprep.mubr.f32.mxu0 0.0
    %431 = vmatmul.mubr.f32.gmra.mrb[0].mxu0 %v313
    %v432 = vpop.f32.mrb[0].mxu0
    %v433 = vadd.f32 %v289, %v432
    %v434 = vpop.f32.mrb[0].mxu0
    %435 = vmatprep.mubr.f32.mxu0 0.0
    %436 = vmatmul.mubr.f32.gmra.mrb[0].mxu0 %v316
    %v437 = vpop.f32.mrb[0].mxu0
    %v438 = vadd.f32 %v290, %v437
    %v439 = vpop.f32.mrb[0].mxu0
    %440 = vmatprep.mubr.f32.mxu0 0.0
    %441 = vmatmul.mubr.f32.gmra.mrb[0].mxu0 %v319
    %v442 = vpop.f32.mrb[0].mxu0
    %v443 = vadd.f32 %v291, %v442
    %v444 = vpop.f32.mrb[0].mxu0
    %445 = vmatprep.mubr.f32.mxu0 0.0
    %446 = vmatmul.mubr.f32.gmra.mrb[0].mxu0 %v322
    %v447 = vpop.f32.mrb[0].mxu0
    %v448 = vadd.f32 %v292, %v447
    %v449 = vpop.f32.mrb[0].mxu0
    %450 = vmatprep.mubr.f32.mxu0 0.0
    %451 = vmatmul.mubr.f32.gmra.mrb[0].mxu0 %v325
    %v452 = vpop.f32.mrb[0].mxu0
    %v453 = vadd.f32 %v293, %v452
    %v454 = vpop.f32.mrb[0].mxu0
    %455 = vmatprep.mubr.f32.mxu0 0.0
    %456 = vmatmul.mubr.f32.gmra.mrb[0].mxu0 %v328
    %v457 = vpop.f32.mrb[0].mxu0
    %v458 = vadd.f32 %v294, %v457
    %v459 = vpop.f32.mrb[0].mxu0
    %460 = vmatprep.mubr.f32.mxu0 0.0
    %461 = vmatmul.mubr.f32.gmra.mrb[0].mxu0 %v331
    %v462 = vpop.f32.mrb[0].mxu0
    %v463 = vadd.f32 %v295, %v462
    %v464 = vpop.f32.mrb[0].mxu0
    %465 = vmatprep.mubr.f32.mxu0 0.0
    %466 = vmatmul.mubr.f32.gmra.mrb[0].mxu0 %v334
    %v467 = vpop.f32.mrb[0].mxu0
    %v468 = vadd.f32 %v296, %v467
    %v469 = vpop.f32.mrb[0].mxu0
    %470 = vmatprep.mubr.f32.mxu0 0.0
    %471 = vmatmul.mubr.f32.gmra.mrb[0].mxu0 %v337
    %v472 = vpop.f32.mrb[0].mxu0
    %v473 = vadd.f32 %v297, %v472
    %v474 = vpop.f32.mrb[0].mxu0
    %475 = vmatprep.mubr.f32.mxu0 0.0
    %476 = vmatmul.mubr.f32.gmra.mrb[0].mxu0 %v340
    %v477 = vpop.f32.mrb[0].mxu0
    %v478 = vadd.f32 %v298, %v477
    %v479 = vpop.f32.mrb[0].mxu0
    %480 = vmatprep.mubr.f32.mxu0 0.0
    %481 = vmatmul.mubr.f32.gmra.mrb[0].mxu0 %v343
    %v482 = vpop.f32.mrb[0].mxu0
    %v483 = vadd.f32 %v299, %v482
    %v484 = vpop.f32.mrb[0].mxu0
    %485 = vmatprep.mubr.f32.mxu0 0.0
    %486 = vmatmul.mubr.f32.gmra.mrb[0].mxu0 %v346
    %v487 = vpop.f32.mrb[0].mxu0
    %v488 = vadd.f32 %v300, %v487
    %v489 = vpop.f32.mrb[0].mxu0
    %490 = vmatprep.mubr.f32.mxu0 0.0
    %491 = vmatmul.mubr.f32.gmra.mrb[0].mxu0 %v349
    %v492 = vpop.f32.mrb[0].mxu0
    %v493 = vadd.f32 %v301, %v492
    %v494 = vpop.f32.mrb[0].mxu0
    %495 = vdwg.mxu0
    %v496 = vlaneseq
    %v497 = vshrl.u32 %v496, 7
    %v498 = vsub.s32 0, %v497
    %v499 = vrot.slane %v87, %v498
    %v500 = vadd.f32 %v418, %v499
    %v501 = vadd.f32 %v423, %v499
    %v502 = vadd.f32 %v428, %v499
    %v503 = vadd.f32 %v433, %v499
    %v504 = vadd.f32 %v438, %v499
    %v505 = vadd.f32 %v443, %v499
    %v506 = vadd.f32 %v448, %v499
    %v507 = vadd.f32 %v453, %v499
    %v508 = vadd.f32 %v458, %v499
    %v509 = vadd.f32 %v463, %v499
    %v510 = vadd.f32 %v468, %v499
    %v511 = vadd.f32 %v473, %v499
    %v512 = vadd.f32 %v478, %v499
    %v513 = vadd.f32 %v483, %v499
    %v514 = vadd.f32 %v488, %v499
    %v515 = vadd.f32 %v493, %v499
    %v516 = vmax.f32 %v500, 0.0
    %v517 = vmax.f32 %v501, 0.0
    %v518 = vmax.f32 %v502, 0.0
    %v519 = vmax.f32 %v503, 0.0
    %v520 = vmax.f32 %v504, 0.0
    %v521 = vmax.f32 %v505, 0.0
    %v522 = vmax.f32 %v506, 0.0
    %v523 = vmax.f32 %v507, 0.0
    %v524 = vmax.f32 %v508, 0.0
    %v525 = vmax.f32 %v509, 0.0
    %v526 = vmax.f32 %v510, 0.0
    %v527 = vmax.f32 %v511, 0.0
    %v528 = vmax.f32 %v512, 0.0
    %v529 = vmax.f32 %v513, 0.0
    %v530 = vmax.f32 %v514, 0.0
    %v531 = vmax.f32 %v515, 0.0
    %v532 = vlaneseq
    %v533 = vshrl.u32 %v532, 7
    %v534 = vsub.s32 0, %v533
    %v535 = vrot.slane %v88, %v534
    %v537 = vsel %vm302, %v210, 0
    %v540 = vsel %vm302, %v211, 0
    %v543 = vsel %vm302, %v212, 0
    %v546 = vsel %vm302, %v213, 0
    %v549 = vsel %vm302, %v214, 0
    %v552 = vsel %vm302, %v215, 0
    %v555 = vsel %vm302, %v216, 0
    %v558 = vsel %vm302, %v217, 0
    %v561 = vsel %vm302, %v218, 0
    %v564 = vsel %vm302, %v219, 0
    %v567 = vsel %vm302, %v220, 0
    %v570 = vsel %vm302, %v221, 0
    %v573 = vsel %vm302, %v222, 0
    %v576 = vsel %vm302, %v223, 0
    %v579 = vsel %vm302, %v224, 0
    %v582 = vsel %vm302, %v225, 0
    %584 = vmatprep.subr.mxu0 0.0
    %585 = vmatpush1.msra.mxu0 %v63
    %586 = vmatprep.subr.mxu0 0.0
    %587 = vmatpush1.msra.mxu0 %v64
    %588 = vmatprep.subr.mxu0 0.0
    %589 = vmatpush1.msra.mxu0 0.0
    %590 = vmatprep.subr.mxu0 0.0
    %591 = vmatpush1.msra.mxu0 0.0
    %592 = vmatprep.subr.mxu0 0.0
    %593 = vmatpush1.msra.mxu0 0.0
    %594 = vmatprep.subr.mxu0 0.0
    %595 = vmatpush1.msra.mxu0 0.0
    %596 = vmatprep.subr.mxu0 0.0
    %597 = vmatpush1.msra.mxu0 0.0
    %598 = vmatprep.subr.mxu0 0.0
    %599 = vmatpush1.msra.mxu0 0.0
    %600 = vmatprep.subr.mxu0 0.0
    %601 = vmatpush1.msra.mxu0 0.0
    %602 = vmatprep.subr.mxu0 0.0
    %603 = vmatpush1.msra.mxu0 0.0
    %604 = vmatprep.subr.mxu0 0.0
    %605 = vmatpush1.msra.mxu0 0.0
    %606 = vmatprep.subr.mxu0 0.0
    %607 = vmatpush1.msra.mxu0 0.0
    %608 = vmatprep.subr.mxu0 0.0
    %609 = vmatpush1.msra.mxu0 0.0
    %610 = vmatprep.subr.mxu0 0.0
    %611 = vmatpush1.msra.mxu0 0.0
    %612 = vmatprep.subr.mxu0 0.0
    %613 = vmatpush1.msra.mxu0 0.0
    %614 = vmatprep.subr.mxu0 0.0
    %615 = vmatpush1.msra.mxu0 0.0
    %616 = vmatprep.subr.mxu0 0.0
    %617 = vmatpush1.msra.mxu0 0.0
    %618 = vmatprep.subr.mxu0 0.0
    %619 = vmatpush1.msra.mxu0 0.0
    %620 = vmatprep.subr.mxu0 0.0
    %621 = vmatpush1.msra.mxu0 0.0
    %622 = vmatprep.subr.mxu0 0.0
    %623 = vmatpush1.msra.mxu0 0.0
    %624 = vmatprep.subr.mxu0 0.0
    %625 = vmatpush1.msra.mxu0 0.0
    %626 = vmatprep.subr.mxu0 0.0
    %627 = vmatpush1.msra.mxu0 0.0
    %628 = vmatprep.subr.mxu0 0.0
    %629 = vmatpush1.msra.mxu0 0.0
    %630 = vmatprep.subr.mxu0 0.0
    %631 = vmatpush1.msra.mxu0 0.0
    %632 = vmatprep.subr.mxu0 0.0
    %633 = vmatpush1.msra.mxu0 0.0
    %634 = vmatprep.subr.mxu0 0.0
    %635 = vmatpush1.msra.mxu0 0.0
    %636 = vmatprep.subr.mxu0 0.0
    %637 = vmatpush1.msra.mxu0 0.0
    %638 = vmatprep.subr.mxu0 0.0
    %639 = vmatpush1.msra.mxu0 0.0
    %640 = vmatprep.subr.mxu0 0.0
    %641 = vmatpush1.msra.mxu0 0.0
    %642 = vmatprep.subr.mxu0 0.0
    %643 = vmatpush1.msra.mxu0 0.0
    %644 = vmatprep.subr.mxu0 0.0
    %645 = vmatpush1.msra.mxu0 0.0
    %646 = vmatprep.subr.mxu0 0.0
    %647 = vmatpush1.msra.mxu0 0.0
    %648 = vmatprep.mubr.f32.mxu0 0.0
    %649 = vmatmul.mubr.f32.gmra.mrb[0].mxu0 %v537
    %v650 = vpop.f32.mrb[0].mxu0
    %v651 = vadd.f32 %v535, %v650
    %v652 = vpop.f32.mrb[0].mxu0
    %653 = vmatprep.mubr.f32.mxu0 0.0
    %654 = vmatmul.mubr.f32.gmra.mrb[0].mxu0 %v540
    %v655 = vpop.f32.mrb[0].mxu0
    %v656 = vadd.f32 %v535, %v655
    %v657 = vpop.f32.mrb[0].mxu0
    %658 = vmatprep.mubr.f32.mxu0 0.0
    %659 = vmatmul.mubr.f32.gmra.mrb[0].mxu0 %v543
    %v660 = vpop.f32.mrb[0].mxu0
    %v661 = vadd.f32 %v535, %v660
    %v662 = vpop.f32.mrb[0].mxu0
    %663 = vmatprep.mubr.f32.mxu0 0.0
    %664 = vmatmul.mubr.f32.gmra.mrb[0].mxu0 %v546
    %v665 = vpop.f32.mrb[0].mxu0
    %v666 = vadd.f32 %v535, %v665
    %v667 = vpop.f32.mrb[0].mxu0
    %668 = vmatprep.mubr.f32.mxu0 0.0
    %669 = vmatmul.mubr.f32.gmra.mrb[0].mxu0 %v549
    %v670 = vpop.f32.mrb[0].mxu0
    %v671 = vadd.f32 %v535, %v670
    %v672 = vpop.f32.mrb[0].mxu0
    %673 = vmatprep.mubr.f32.mxu0 0.0
    %674 = vmatmul.mubr.f32.gmra.mrb[0].mxu0 %v552
    %v675 = vpop.f32.mrb[0].mxu0
    %v676 = vadd.f32 %v535, %v675
    %v677 = vpop.f32.mrb[0].mxu0
    %678 = vmatprep.mubr.f32.mxu0 0.0
    %679 = vmatmul.mubr.f32.gmra.mrb[0].mxu0 %v555
    %v680 = vpop.f32.mrb[0].mxu0
    %v681 = vadd.f32 %v535, %v680
    %v682 = vpop.f32.mrb[0].mxu0
    %683 = vmatprep.mubr.f32.mxu0 0.0
    %684 = vmatmul.mubr.f32.gmra.mrb[0].mxu0 %v558
    %v685 = vpop.f32.mrb[0].mxu0
    %v686 = vadd.f32 %v535, %v685
    %v687 = vpop.f32.mrb[0].mxu0
    %688 = vmatprep.mubr.f32.mxu0 0.0
    %689 = vmatmul.mubr.f32.gmra.mrb[0].mxu0 %v561
    %v690 = vpop.f32.mrb[0].mxu0
    %v691 = vadd.f32 %v535, %v690
    %v692 = vpop.f32.mrb[0].mxu0
    %693 = vmatprep.mubr.f32.mxu0 0.0
    %694 = vmatmul.mubr.f32.gmra.mrb[0].mxu0 %v564
    %v695 = vpop.f32.mrb[0].mxu0
    %v696 = vadd.f32 %v535, %v695
    %v697 = vpop.f32.mrb[0].mxu0
    %698 = vmatprep.mubr.f32.mxu0 0.0
    %699 = vmatmul.mubr.f32.gmra.mrb[0].mxu0 %v567
    %v700 = vpop.f32.mrb[0].mxu0
    %v701 = vadd.f32 %v535, %v700
    %v702 = vpop.f32.mrb[0].mxu0
    %703 = vmatprep.mubr.f32.mxu0 0.0
    %704 = vmatmul.mubr.f32.gmra.mrb[0].mxu0 %v570
    %v705 = vpop.f32.mrb[0].mxu0
    %v706 = vadd.f32 %v535, %v705
    %v707 = vpop.f32.mrb[0].mxu0
    %708 = vmatprep.mubr.f32.mxu0 0.0
    %709 = vmatmul.mubr.f32.gmra.mrb[0].mxu0 %v573
    %v710 = vpop.f32.mrb[0].mxu0
    %v711 = vadd.f32 %v535, %v710
    %v712 = vpop.f32.mrb[0].mxu0
    %713 = vmatprep.mubr.f32.mxu0 0.0
    %714 = vmatmul.mubr.f32.gmra.mrb[0].mxu0 %v576
    %v715 = vpop.f32.mrb[0].mxu0
    %v716 = vadd.f32 %v535, %v715
    %v717 = vpop.f32.mrb[0].mxu0
    %718 = vmatprep.mubr.f32.mxu0 0.0
    %719 = vmatmul.mubr.f32.gmra.mrb[0].mxu0 %v579
    %v720 = vpop.f32.mrb[0].mxu0
    %v721 = vadd.f32 %v535, %v720
    %v722 = vpop.f32.mrb[0].mxu0
    %723 = vmatprep.mubr.f32.mxu0 0.0
    %724 = vmatmul.mubr.f32.gmra.mrb[0].mxu0 %v582
    %v725 = vpop.f32.mrb[0].mxu0
    %v726 = vadd.f32 %v535, %v725
    %v727 = vpop.f32.mrb[0].mxu0
    %728 = vdwg.mxu0
    %v729 = vmax.f32 %v651, 0.0
    %v730 = vmax.f32 %v656, 0.0
    %v731 = vmax.f32 %v661, 0.0
    %v732 = vmax.f32 %v666, 0.0
    %v733 = vmax.f32 %v671, 0.0
    %v734 = vmax.f32 %v676, 0.0
    %v735 = vmax.f32 %v681, 0.0
    %v736 = vmax.f32 %v686, 0.0
    %v737 = vmax.f32 %v691, 0.0
    %v738 = vmax.f32 %v696, 0.0
    %v739 = vmax.f32 %v701, 0.0
    %v740 = vmax.f32 %v706, 0.0
    %v741 = vmax.f32 %v711, 0.0
    %v742 = vmax.f32 %v716, 0.0
    %v743 = vmax.f32 %v721, 0.0
    %v744 = vmax.f32 %v726, 0.0
    %v745 = vlaneseq
    %v746 = vshrl.u32 %v745, 7
    %v747 = vsub.s32 0, %v746
    %v748 = vrot.slane %v60, %v747
    %749 = vmatprep.subr.mxu0 0.0
    %750 = vmatpush1.msra.mxu0 %v58
    %751 = vmatprep.subr.mxu0 0.0
    %752 = vmatpush1.msra.mxu0 %v59
    %753 = vmatprep.subr.mxu0 0.0
    %754 = vmatpush1.msra.mxu0 0.0
    %755 = vmatprep.subr.mxu0 0.0
    %756 = vmatpush1.msra.mxu0 0.0
    %757 = vmatprep.subr.mxu0 0.0
    %758 = vmatpush1.msra.mxu0 0.0
    %759 = vmatprep.subr.mxu0 0.0
    %760 = vmatpush1.msra.mxu0 0.0
    %761 = vmatprep.subr.mxu0 0.0
    %762 = vmatpush1.msra.mxu0 0.0
    %763 = vmatprep.subr.mxu0 0.0
    %764 = vmatpush1.msra.mxu0 0.0
    %765 = vmatprep.subr.mxu0 0.0
    %766 = vmatpush1.msra.mxu0 0.0
    %767 = vmatprep.subr.mxu0 0.0
    %768 = vmatpush1.msra.mxu0 0.0
    %769 = vmatprep.subr.mxu0 0.0
    %770 = vmatpush1.msra.mxu0 0.0
    %771 = vmatprep.subr.mxu0 0.0
    %772 = vmatpush1.msra.mxu0 0.0
    %773 = vmatprep.subr.mxu0 0.0
    %774 = vmatpush1.msra.mxu0 0.0
    %775 = vmatprep.subr.mxu0 0.0
    %776 = vmatpush1.msra.mxu0 0.0
    %777 = vmatprep.subr.mxu0 0.0
    %778 = vmatpush1.msra.mxu0 0.0
    %779 = vmatprep.subr.mxu0 0.0
    %780 = vmatpush1.msra.mxu0 0.0
    %781 = vmatprep.subr.mxu0 0.0
    %782 = vmatpush1.msra.mxu0 0.0
    %783 = vmatprep.subr.mxu0 0.0
    %784 = vmatpush1.msra.mxu0 0.0
    %785 = vmatprep.subr.mxu0 0.0
    %786 = vmatpush1.msra.mxu0 0.0
    %787 = vmatprep.subr.mxu0 0.0
    %788 = vmatpush1.msra.mxu0 0.0
    %789 = vmatprep.subr.mxu0 0.0
    %790 = vmatpush1.msra.mxu0 0.0
    %791 = vmatprep.subr.mxu0 0.0
    %792 = vmatpush1.msra.mxu0 0.0
    %793 = vmatprep.subr.mxu0 0.0
    %794 = vmatpush1.msra.mxu0 0.0
    %795 = vmatprep.subr.mxu0 0.0
    %796 = vmatpush1.msra.mxu0 0.0
    %797 = vmatprep.subr.mxu0 0.0
    %798 = vmatpush1.msra.mxu0 0.0
    %799 = vmatprep.subr.mxu0 0.0
    %800 = vmatpush1.msra.mxu0 0.0
    %801 = vmatprep.subr.mxu0 0.0
    %802 = vmatpush1.msra.mxu0 0.0
    %803 = vmatprep.subr.mxu0 0.0
    %804 = vmatpush1.msra.mxu0 0.0
    %805 = vmatprep.subr.mxu0 0.0
    %806 = vmatpush1.msra.mxu0 0.0
    %807 = vmatprep.subr.mxu0 0.0
    %808 = vmatpush1.msra.mxu0 0.0
    %809 = vmatprep.subr.mxu0 0.0
    %810 = vmatpush1.msra.mxu0 0.0
    %811 = vmatprep.subr.mxu0 0.0
    %812 = vmatpush1.msra.mxu0 0.0
    %813 = vmatprep.mubr.f32.mxu0 0.0
    %814 = vmatmul.mubr.f32.gmra.mrb[0].mxu0 %v537
    %v815 = vpop.f32.mrb[0].mxu0
    %v816 = vadd.f32 %v748, %v815
    %v817 = vpop.f32.mrb[0].mxu0
    %818 = vmatprep.mubr.f32.mxu0 0.0
    %819 = vmatmul.mubr.f32.gmra.mrb[0].mxu0 %v540
    %v820 = vpop.f32.mrb[0].mxu0
    %v821 = vadd.f32 %v748, %v820
    %v822 = vpop.f32.mrb[0].mxu0
    %823 = vmatprep.mubr.f32.mxu0 0.0
    %824 = vmatmul.mubr.f32.gmra.mrb[0].mxu0 %v543
    %v825 = vpop.f32.mrb[0].mxu0
    %v826 = vadd.f32 %v748, %v825
    %v827 = vpop.f32.mrb[0].mxu0
    %828 = vmatprep.mubr.f32.mxu0 0.0
    %829 = vmatmul.mubr.f32.gmra.mrb[0].mxu0 %v546
    %v830 = vpop.f32.mrb[0].mxu0
    %v831 = vadd.f32 %v748, %v830
    %v832 = vpop.f32.mrb[0].mxu0
    %833 = vmatprep.mubr.f32.mxu0 0.0
    %834 = vmatmul.mubr.f32.gmra.mrb[0].mxu0 %v549
    %v835 = vpop.f32.mrb[0].mxu0
    %v836 = vadd.f32 %v748, %v835
    %v837 = vpop.f32.mrb[0].mxu0
    %838 = vmatprep.mubr.f32.mxu0 0.0
    %839 = vmatmul.mubr.f32.gmra.mrb[0].mxu0 %v552
    %v840 = vpop.f32.mrb[0].mxu0
    %v841 = vadd.f32 %v748, %v840
    %v842 = vpop.f32.mrb[0].mxu0
    %843 = vmatprep.mubr.f32.mxu0 0.0
    %844 = vmatmul.mubr.f32.gmra.mrb[0].mxu0 %v555
    %v845 = vpop.f32.mrb[0].mxu0
    %v846 = vadd.f32 %v748, %v845
    %v847 = vpop.f32.mrb[0].mxu0
    %848 = vmatprep.mubr.f32.mxu0 0.0
    %849 = vmatmul.mubr.f32.gmra.mrb[0].mxu0 %v558
    %v850 = vpop.f32.mrb[0].mxu0
    %v851 = vadd.f32 %v748, %v850
    %v852 = vpop.f32.mrb[0].mxu0
    %853 = vmatprep.mubr.f32.mxu0 0.0
    %854 = vmatmul.mubr.f32.gmra.mrb[0].mxu0 %v561
    %v855 = vpop.f32.mrb[0].mxu0
    %v856 = vadd.f32 %v748, %v855
    %v857 = vpop.f32.mrb[0].mxu0
    %858 = vmatprep.mubr.f32.mxu0 0.0
    %859 = vmatmul.mubr.f32.gmra.mrb[0].mxu0 %v564
    %v860 = vpop.f32.mrb[0].mxu0
    %v861 = vadd.f32 %v748, %v860
    %v862 = vpop.f32.mrb[0].mxu0
    %863 = vmatprep.mubr.f32.mxu0 0.0
    %864 = vmatmul.mubr.f32.gmra.mrb[0].mxu0 %v567
    %v865 = vpop.f32.mrb[0].mxu0
    %v866 = vadd.f32 %v748, %v865
    %v867 = vpop.f32.mrb[0].mxu0
    %868 = vmatprep.mubr.f32.mxu0 0.0
    %869 = vmatmul.mubr.f32.gmra.mrb[0].mxu0 %v570
    %v870 = vpop.f32.mrb[0].mxu0
    %v871 = vadd.f32 %v748, %v870
    %v872 = vpop.f32.mrb[0].mxu0
    %873 = vmatprep.mubr.f32.mxu0 0.0
    %874 = vmatmul.mubr.f32.gmra.mrb[0].mxu0 %v573
    %v875 = vpop.f32.mrb[0].mxu0
    %v876 = vadd.f32 %v748, %v875
    %v877 = vpop.f32.mrb[0].mxu0
    %878 = vmatprep.mubr.f32.mxu0 0.0
    %879 = vmatmul.mubr.f32.gmra.mrb[0].mxu0 %v576
    %v880 = vpop.f32.mrb[0].mxu0
    %v881 = vadd.f32 %v748, %v880
    %v882 = vpop.f32.mrb[0].mxu0
    %883 = vmatprep.mubr.f32.mxu0 0.0
    %884 = vmatmul.mubr.f32.gmra.mrb[0].mxu0 %v579
    %v885 = vpop.f32.mrb[0].mxu0
    %v886 = vadd.f32 %v748, %v885
    %v887 = vpop.f32.mrb[0].mxu0
    %888 = vmatprep.mubr.f32.mxu0 0.0
    %889 = vmatmul.mubr.f32.gmra.mrb[0].mxu0 %v582
    %v890 = vpop.f32.mrb[0].mxu0
    %v891 = vadd.f32 %v748, %v890
    %v892 = vpop.f32.mrb[0].mxu0
    %893 = vdwg.mxu0
    %v894 = vmul.f32 %v516, %v729
    %v895 = vmul.f32 %v517, %v730
    %v896 = vmul.f32 %v518, %v731
    %v897 = vmul.f32 %v519, %v732
    %v898 = vmul.f32 %v520, %v733
    %v899 = vmul.f32 %v521, %v734
    %v900 = vmul.f32 %v522, %v735
    %v901 = vmul.f32 %v523, %v736
    %v902 = vmul.f32 %v524, %v737
    %v903 = vmul.f32 %v525, %v738
    %v904 = vmul.f32 %v526, %v739
    %v905 = vmul.f32 %v527, %v740
    %v906 = vmul.f32 %v528, %v741
    %v907 = vmul.f32 %v529, %v742
    %v908 = vmul.f32 %v530, %v743
    %v909 = vmul.f32 %v531, %v744
    %v910 = vmul.f32 %v38, %v816
    %v911 = vmul.f32 %v39, %v821
    %v912 = vmul.f32 %v40, %v826
    %v913 = vmul.f32 %v41, %v831
    %v914 = vmul.f32 %v42, %v836
    %v915 = vmul.f32 %v43, %v841
    %v916 = vmul.f32 %v44, %v846
    %v917 = vmul.f32 %v45, %v851
    %v918 = vmul.f32 %v46, %v856
    %v919 = vmul.f32 %v47, %v861
    %v920 = vmul.f32 %v48, %v866
    %v921 = vmul.f32 %v49, %v871
    %v922 = vmul.f32 %v50, %v876
    %v923 = vmul.f32 %v51, %v881
    %v924 = vmul.f32 %v52, %v886
    %v925 = vmul.f32 %v53, %v891
    %v927 = vsel %vm302, %v910, 0
    %v930 = vsel %vm302, %v911, 0
    %v933 = vsel %vm302, %v912, 0
    %v936 = vsel %vm302, %v913, 0
    %v939 = vsel %vm302, %v914, 0
    %v942 = vsel %vm302, %v915, 0
    %v945 = vsel %vm302, %v916, 0
    %v948 = vsel %vm302, %v917, 0
    %v951 = vsel %vm302, %v918, 0
    %v954 = vsel %vm302, %v919, 0
    %v957 = vsel %vm302, %v920, 0
    %v960 = vsel %vm302, %v921, 0
    %v963 = vsel %vm302, %v922, 0
    %v966 = vsel %vm302, %v923, 0
    %v969 = vsel %vm302, %v924, 0
    %v972 = vsel %vm302, %v925, 0
    %974 = vmatprep.subr.mxu0 0.0
    %975 = vmatpush1.msra.mxu0 %v81
    %976 = vmatprep.subr.mxu0 0.0
    %977 = vmatpush1.msra.mxu0 %v82
    %978 = vmatprep.subr.mxu0 0.0
    %979 = vmatpush1.msra.mxu0 0.0
    %980 = vmatprep.subr.mxu0 0.0
    %981 = vmatpush1.msra.mxu0 0.0
    %982 = vmatprep.subr.mxu0 0.0
    %983 = vmatpush1.msra.mxu0 0.0
    %984 = vmatprep.subr.mxu0 0.0
    %985 = vmatpush1.msra.mxu0 0.0
    %986 = vmatprep.subr.mxu0 0.0
    %987 = vmatpush1.msra.mxu0 0.0
    %988 = vmatprep.subr.mxu0 0.0
    %989 = vmatpush1.msra.mxu0 0.0
    %990 = vmatprep.subr.mxu0 0.0
    %991 = vmatpush1.msra.mxu0 0.0
    %992 = vmatprep.subr.mxu0 0.0
    %993 = vmatpush1.msra.mxu0 0.0
    %994 = vmatprep.subr.mxu0 0.0
    %995 = vmatpush1.msra.mxu0 0.0
    %996 = vmatprep.subr.mxu0 0.0
    %997 = vmatpush1.msra.mxu0 0.0
    %998 = vmatprep.subr.mxu0 0.0
    %999 = vmatpush1.msra.mxu0 0.0
    %1000 = vmatprep.subr.mxu0 0.0
    %1001 = vmatpush1.msra.mxu0 0.0
    %1002 = vmatprep.subr.mxu0 0.0
    %1003 = vmatpush1.msra.mxu0 0.0
    %1004 = vmatprep.subr.mxu0 0.0
    %1005 = vmatpush1.msra.mxu0 0.0
    %1006 = vmatprep.subr.mxu0 0.0
    %1007 = vmatpush1.msra.mxu0 0.0
    %1008 = vmatprep.subr.mxu0 0.0
    %1009 = vmatpush1.msra.mxu0 0.0
    %1010 = vmatprep.subr.mxu0 0.0
    %1011 = vmatpush1.msra.mxu0 0.0
    %1012 = vmatprep.subr.mxu0 0.0
    %1013 = vmatpush1.msra.mxu0 0.0
    %1014 = vmatprep.subr.mxu0 0.0
    %1015 = vmatpush1.msra.mxu0 0.0
    %1016 = vmatprep.subr.mxu0 0.0
    %1017 = vmatpush1.msra.mxu0 0.0
    %1018 = vmatprep.subr.mxu0 0.0
    %1019 = vmatpush1.msra.mxu0 0.0
    %1020 = vmatprep.subr.mxu0 0.0
    %1021 = vmatpush1.msra.mxu0 0.0
    %1022 = vmatprep.subr.mxu0 0.0
    %1023 = vmatpush1.msra.mxu0 0.0
    %1024 = vmatprep.subr.mxu0 0.0
    %1025 = vmatpush1.msra.mxu0 0.0
    %1026 = vmatprep.subr.mxu0 0.0
    %1027 = vmatpush1.msra.mxu0 0.0
    %1028 = vmatprep.subr.mxu0 0.0
    %1029 = vmatpush1.msra.mxu0 0.0
    %1030 = vmatprep.subr.mxu0 0.0
    %1031 = vmatpush1.msra.mxu0 0.0
    %1032 = vmatprep.subr.mxu0 0.0
    %1033 = vmatpush1.msra.mxu0 0.0
    %1034 = vmatprep.subr.mxu0 0.0
    %1035 = vmatpush1.msra.mxu0 0.0
    %1036 = vmatprep.subr.mxu0 0.0
    %1037 = vmatpush1.msra.mxu0 0.0
    %1038 = vmatprep.mubr.f32.mxu0 0.0
    %1039 = vmatmul.mubr.f32.gmra.mrb[0].mxu0 %v927
    %v1040 = vpop.f32.mrb[0].mxu0
    %v1041 = vadd.f32 0.0, %v1040
    %v1042 = vpop.f32.mrb[0].mxu0
    %1043 = vmatprep.mubr.f32.mxu0 0.0
    %1044 = vmatmul.mubr.f32.gmra.mrb[0].mxu0 %v930
    %v1045 = vpop.f32.mrb[0].mxu0
    %v1046 = vadd.f32 0.0, %v1045
    %v1047 = vpop.f32.mrb[0].mxu0
    %1048 = vmatprep.mubr.f32.mxu0 0.0
    %1049 = vmatmul.mubr.f32.gmra.mrb[0].mxu0 %v933
    %v1050 = vpop.f32.mrb[0].mxu0
    %v1051 = vadd.f32 0.0, %v1050
    %v1052 = vpop.f32.mrb[0].mxu0
    %1053 = vmatprep.mubr.f32.mxu0 0.0
    %1054 = vmatmul.mubr.f32.gmra.mrb[0].mxu0 %v936
    %v1055 = vpop.f32.mrb[0].mxu0
    %v1056 = vadd.f32 0.0, %v1055
    %v1057 = vpop.f32.mrb[0].mxu0
    %1058 = vmatprep.mubr.f32.mxu0 0.0
    %1059 = vmatmul.mubr.f32.gmra.mrb[0].mxu0 %v939
    %v1060 = vpop.f32.mrb[0].mxu0
    %v1061 = vadd.f32 0.0, %v1060
    %v1062 = vpop.f32.mrb[0].mxu0
    %1063 = vmatprep.mubr.f32.mxu0 0.0
    %1064 = vmatmul.mubr.f32.gmra.mrb[0].mxu0 %v942
    %v1065 = vpop.f32.mrb[0].mxu0
    %v1066 = vadd.f32 0.0, %v1065
    %v1067 = vpop.f32.mrb[0].mxu0
    %1068 = vmatprep.mubr.f32.mxu0 0.0
    %1069 = vmatmul.mubr.f32.gmra.mrb[0].mxu0 %v945
    %v1070 = vpop.f32.mrb[0].mxu0
    %v1071 = vadd.f32 0.0, %v1070
    %v1072 = vpop.f32.mrb[0].mxu0
    %1073 = vmatprep.mubr.f32.mxu0 0.0
    %1074 = vmatmul.mubr.f32.gmra.mrb[0].mxu0 %v948
    %v1075 = vpop.f32.mrb[0].mxu0
    %v1076 = vadd.f32 0.0, %v1075
    %v1077 = vpop.f32.mrb[0].mxu0
    %1078 = vmatprep.mubr.f32.mxu0 0.0
    %1079 = vmatmul.mubr.f32.gmra.mrb[0].mxu0 %v951
    %v1080 = vpop.f32.mrb[0].mxu0
    %v1081 = vadd.f32 0.0, %v1080
    %v1082 = vpop.f32.mrb[0].mxu0
    %1083 = vmatprep.mubr.f32.mxu0 0.0
    %1084 = vmatmul.mubr.f32.gmra.mrb[0].mxu0 %v954
    %v1085 = vpop.f32.mrb[0].mxu0
    %v1086 = vadd.f32 0.0, %v1085
    %v1087 = vpop.f32.mrb[0].mxu0
    %1088 = vmatprep.mubr.f32.mxu0 0.0
    %1089 = vmatmul.mubr.f32.gmra.mrb[0].mxu0 %v957
    %v1090 = vpop.f32.mrb[0].mxu0
    %v1091 = vadd.f32 0.0, %v1090
    %v1092 = vpop.f32.mrb[0].mxu0
    %1093 = vmatprep.mubr.f32.mxu0 0.0
    %1094 = vmatmul.mubr.f32.gmra.mrb[0].mxu0 %v960
    %v1095 = vpop.f32.mrb[0].mxu0
    %v1096 = vadd.f32 0.0, %v1095
    %v1097 = vpop.f32.mrb[0].mxu0
    %1098 = vmatprep.mubr.f32.mxu0 0.0
    %1099 = vmatmul.mubr.f32.gmra.mrb[0].mxu0 %v963
    %v1100 = vpop.f32.mrb[0].mxu0
    %v1101 = vadd.f32 0.0, %v1100
    %v1102 = vpop.f32.mrb[0].mxu0
    %1103 = vmatprep.mubr.f32.mxu0 0.0
    %1104 = vmatmul.mubr.f32.gmra.mrb[0].mxu0 %v966
    %v1105 = vpop.f32.mrb[0].mxu0
    %v1106 = vadd.f32 0.0, %v1105
    %v1107 = vpop.f32.mrb[0].mxu0
    %1108 = vmatprep.mubr.f32.mxu0 0.0
    %1109 = vmatmul.mubr.f32.gmra.mrb[0].mxu0 %v969
    %v1110 = vpop.f32.mrb[0].mxu0
    %v1111 = vadd.f32 0.0, %v1110
    %v1112 = vpop.f32.mrb[0].mxu0
    %1113 = vmatprep.mubr.f32.mxu0 0.0
    %1114 = vmatmul.mubr.f32.gmra.mrb[0].mxu0 %v972
    %v1115 = vpop.f32.mrb[0].mxu0
    %v1116 = vadd.f32 0.0, %v1115
    %v1117 = vpop.f32.mrb[0].mxu0
    %1118 = vdwg.mxu0
    %1119 = vmatprep.subr.mxu0 0.0
    %1120 = vmatpush1.msra.mxu0 %v65
    %1121 = vmatprep.subr.mxu0 0.0
    %1122 = vmatpush1.msra.mxu0 %v66
    %1123 = vmatprep.subr.mxu0 0.0
    %1124 = vmatpush1.msra.mxu0 %v67
    %1125 = vmatprep.subr.mxu0 0.0
    %1126 = vmatpush1.msra.mxu0 %v68
    %1127 = vmatprep.subr.mxu0 0.0
    %1128 = vmatpush1.msra.mxu0 %v69
    %1129 = vmatprep.subr.mxu0 0.0
    %1130 = vmatpush1.msra.mxu0 %v70
    %1131 = vmatprep.subr.mxu0 0.0
    %1132 = vmatpush1.msra.mxu0 %v71
    %1133 = vmatprep.subr.mxu0 0.0
    %1134 = vmatpush1.msra.mxu0 %v72
    %1135 = vmatprep.subr.mxu0 0.0
    %1136 = vmatpush1.msra.mxu0 %v73
    %1137 = vmatprep.subr.mxu0 0.0
    %1138 = vmatpush1.msra.mxu0 %v74
    %1139 = vmatprep.subr.mxu0 0.0
    %1140 = vmatpush1.msra.mxu0 %v75
    %1141 = vmatprep.subr.mxu0 0.0
    %1142 = vmatpush1.msra.mxu0 %v76
    %1143 = vmatprep.subr.mxu0 0.0
    %1144 = vmatpush1.msra.mxu0 %v77
    %1145 = vmatprep.subr.mxu0 0.0
    %1146 = vmatpush1.msra.mxu0 %v78
    %1147 = vmatprep.subr.mxu0 0.0
    %1148 = vmatpush1.msra.mxu0 %v79
    %1149 = vmatprep.subr.mxu0 0.0
    %1150 = vmatpush1.msra.mxu0 %v80
    %1151 = vmatprep.subr.mxu0 0.0
    %1152 = vmatpush1.msra.mxu0 0.0
    %1153 = vmatprep.subr.mxu0 0.0
    %1154 = vmatpush1.msra.mxu0 0.0
    %1155 = vmatprep.subr.mxu0 0.0
    %1156 = vmatpush1.msra.mxu0 0.0
    %1157 = vmatprep.subr.mxu0 0.0
    %1158 = vmatpush1.msra.mxu0 0.0
    %1159 = vmatprep.subr.mxu0 0.0
    %1160 = vmatpush1.msra.mxu0 0.0
    %1161 = vmatprep.subr.mxu0 0.0
    %1162 = vmatpush1.msra.mxu0 0.0
    %1163 = vmatprep.subr.mxu0 0.0
    %1164 = vmatpush1.msra.mxu0 0.0
    %1165 = vmatprep.subr.mxu0 0.0
    %1166 = vmatpush1.msra.mxu0 0.0
    %1167 = vmatprep.subr.mxu0 0.0
    %1168 = vmatpush1.msra.mxu0 0.0
    %1169 = vmatprep.subr.mxu0 0.0
    %1170 = vmatpush1.msra.mxu0 0.0
    %1171 = vmatprep.subr.mxu0 0.0
    %1172 = vmatpush1.msra.mxu0 0.0
    %1173 = vmatprep.subr.mxu0 0.0
    %1174 = vmatpush1.msra.mxu0 0.0
    %1175 = vmatprep.subr.mxu0 0.0
    %1176 = vmatpush1.msra.mxu0 0.0
    %1177 = vmatprep.subr.mxu0 0.0
    %1178 = vmatpush1.msra.mxu0 0.0
    %1179 = vmatprep.subr.mxu0 0.0
    %1180 = vmatpush1.msra.mxu0 0.0
    %1181 = vmatprep.subr.mxu0 0.0
    %1182 = vmatpush1.msra.mxu0 0.0
    %1183 = vmatprep.mubr.f32.mxu0 0.0
    %1184 = vmatmul.mubr.f32.gmra.mrb[0].mxu0 %v894
    %v1185 = vpop.f32.mrb[0].mxu0
    %v1186 = vadd.f32 %v1041, %v1185
    %v1187 = vpop.f32.mrb[0].mxu0
    %1188 = vmatprep.mubr.f32.mxu0 0.0
    %1189 = vmatmul.mubr.f32.gmra.mrb[0].mxu0 %v895
    %v1190 = vpop.f32.mrb[0].mxu0
    %v1191 = vadd.f32 %v1046, %v1190
    %v1192 = vpop.f32.mrb[0].mxu0
    %1193 = vmatprep.mubr.f32.mxu0 0.0
    %1194 = vmatmul.mubr.f32.gmra.mrb[0].mxu0 %v896
    %v1195 = vpop.f32.mrb[0].mxu0
    %v1196 = vadd.f32 %v1051, %v1195
    %v1197 = vpop.f32.mrb[0].mxu0
    %1198 = vmatprep.mubr.f32.mxu0 0.0
    %1199 = vmatmul.mubr.f32.gmra.mrb[0].mxu0 %v897
    %v1200 = vpop.f32.mrb[0].mxu0
    %v1201 = vadd.f32 %v1056, %v1200
    %v1202 = vpop.f32.mrb[0].mxu0
    %1203 = vmatprep.mubr.f32.mxu0 0.0
    %1204 = vmatmul.mubr.f32.gmra.mrb[0].mxu0 %v898
    %v1205 = vpop.f32.mrb[0].mxu0
    %v1206 = vadd.f32 %v1061, %v1205
    %v1207 = vpop.f32.mrb[0].mxu0
    %1208 = vmatprep.mubr.f32.mxu0 0.0
    %1209 = vmatmul.mubr.f32.gmra.mrb[0].mxu0 %v899
    %v1210 = vpop.f32.mrb[0].mxu0
    %v1211 = vadd.f32 %v1066, %v1210
    %v1212 = vpop.f32.mrb[0].mxu0
    %1213 = vmatprep.mubr.f32.mxu0 0.0
    %1214 = vmatmul.mubr.f32.gmra.mrb[0].mxu0 %v900
    %v1215 = vpop.f32.mrb[0].mxu0
    %v1216 = vadd.f32 %v1071, %v1215
    %v1217 = vpop.f32.mrb[0].mxu0
    %1218 = vmatprep.mubr.f32.mxu0 0.0
    %1219 = vmatmul.mubr.f32.gmra.mrb[0].mxu0 %v901
    %v1220 = vpop.f32.mrb[0].mxu0
    %v1221 = vadd.f32 %v1076, %v1220
    %v1222 = vpop.f32.mrb[0].mxu0
    %1223 = vmatprep.mubr.f32.mxu0 0.0
    %1224 = vmatmul.mubr.f32.gmra.mrb[0].mxu0 %v902
    %v1225 = vpop.f32.mrb[0].mxu0
    %v1226 = vadd.f32 %v1081, %v1225
    %v1227 = vpop.f32.mrb[0].mxu0
    %1228 = vmatprep.mubr.f32.mxu0 0.0
    %1229 = vmatmul.mubr.f32.gmra.mrb[0].mxu0 %v903
    %v1230 = vpop.f32.mrb[0].mxu0
    %v1231 = vadd.f32 %v1086, %v1230
    %v1232 = vpop.f32.mrb[0].mxu0
    %1233 = vmatprep.mubr.f32.mxu0 0.0
    %1234 = vmatmul.mubr.f32.gmra.mrb[0].mxu0 %v904
    %v1235 = vpop.f32.mrb[0].mxu0
    %v1236 = vadd.f32 %v1091, %v1235
    %v1237 = vpop.f32.mrb[0].mxu0
    %1238 = vmatprep.mubr.f32.mxu0 0.0
    %1239 = vmatmul.mubr.f32.gmra.mrb[0].mxu0 %v905
    %v1240 = vpop.f32.mrb[0].mxu0
    %v1241 = vadd.f32 %v1096, %v1240
    %v1242 = vpop.f32.mrb[0].mxu0
    %1243 = vmatprep.mubr.f32.mxu0 0.0
    %1244 = vmatmul.mubr.f32.gmra.mrb[0].mxu0 %v906
    %v1245 = vpop.f32.mrb[0].mxu0
    %v1246 = vadd.f32 %v1101, %v1245
    %v1247 = vpop.f32.mrb[0].mxu0
    %1248 = vmatprep.mubr.f32.mxu0 0.0
    %1249 = vmatmul.mubr.f32.gmra.mrb[0].mxu0 %v907
    %v1250 = vpop.f32.mrb[0].mxu0
    %v1251 = vadd.f32 %v1106, %v1250
    %v1252 = vpop.f32.mrb[0].mxu0
    %1253 = vmatprep.mubr.f32.mxu0 0.0
    %1254 = vmatmul.mubr.f32.gmra.mrb[0].mxu0 %v908
    %v1255 = vpop.f32.mrb[0].mxu0
    %v1256 = vadd.f32 %v1111, %v1255
    %v1257 = vpop.f32.mrb[0].mxu0
    %1258 = vmatprep.mubr.f32.mxu0 0.0
    %1259 = vmatmul.mubr.f32.gmra.mrb[0].mxu0 %v909
    %v1260 = vpop.f32.mrb[0].mxu0
    %v1261 = vadd.f32 %v1116, %v1260
    %v1262 = vpop.f32.mrb[0].mxu0
    %1263 = vdwg.mxu0
    %1264 = vmatprep.subr.mxu0 0.0
    %1265 = vmatpush1.msra.mxu0 %v83
    %1266 = vmatprep.subr.mxu0 0.0
    %1267 = vmatpush1.msra.mxu0 %v84
    %1268 = vmatprep.subr.mxu0 0.0
    %1269 = vmatpush1.msra.mxu0 0.0
    %1270 = vmatprep.subr.mxu0 0.0
    %1271 = vmatpush1.msra.mxu0 0.0
    %1272 = vmatprep.subr.mxu0 0.0
    %1273 = vmatpush1.msra.mxu0 0.0
    %1274 = vmatprep.subr.mxu0 0.0
    %1275 = vmatpush1.msra.mxu0 0.0
    %1276 = vmatprep.subr.mxu0 0.0
    %1277 = vmatpush1.msra.mxu0 0.0
    %1278 = vmatprep.subr.mxu0 0.0
    %1279 = vmatpush1.msra.mxu0 0.0
    %1280 = vmatprep.subr.mxu0 0.0
    %1281 = vmatpush1.msra.mxu0 0.0
    %1282 = vmatprep.subr.mxu0 0.0
    %1283 = vmatpush1.msra.mxu0 0.0
    %1284 = vmatprep.subr.mxu0 0.0
    %1285 = vmatpush1.msra.mxu0 0.0
    %1286 = vmatprep.subr.mxu0 0.0
    %1287 = vmatpush1.msra.mxu0 0.0
    %1288 = vmatprep.subr.mxu0 0.0
    %1289 = vmatpush1.msra.mxu0 0.0
    %1290 = vmatprep.subr.mxu0 0.0
    %1291 = vmatpush1.msra.mxu0 0.0
    %1292 = vmatprep.subr.mxu0 0.0
    %1293 = vmatpush1.msra.mxu0 0.0
    %1294 = vmatprep.subr.mxu0 0.0
    %1295 = vmatpush1.msra.mxu0 0.0
    %1296 = vmatprep.subr.mxu0 0.0
    %1297 = vmatpush1.msra.mxu0 0.0
    %1298 = vmatprep.subr.mxu0 0.0
    %1299 = vmatpush1.msra.mxu0 0.0
    %1300 = vmatprep.subr.mxu0 0.0
    %1301 = vmatpush1.msra.mxu0 0.0
    %1302 = vmatprep.subr.mxu0 0.0
    %1303 = vmatpush1.msra.mxu0 0.0
    %1304 = vmatprep.subr.mxu0 0.0
    %1305 = vmatpush1.msra.mxu0 0.0
    %1306 = vmatprep.subr.mxu0 0.0
    %1307 = vmatpush1.msra.mxu0 0.0
    %1308 = vmatprep.subr.mxu0 0.0
    %1309 = vmatpush1.msra.mxu0 0.0
    %1310 = vmatprep.subr.mxu0 0.0
    %1311 = vmatpush1.msra.mxu0 0.0
    %1312 = vmatprep.subr.mxu0 0.0
    %1313 = vmatpush1.msra.mxu0 0.0
    %1314 = vmatprep.subr.mxu0 0.0
    %1315 = vmatpush1.msra.mxu0 0.0
    %1316 = vmatprep.subr.mxu0 0.0
    %1317 = vmatpush1.msra.mxu0 0.0
    %1318 = vmatprep.subr.mxu0 0.0
    %1319 = vmatpush1.msra.mxu0 0.0
    %1320 = vmatprep.subr.mxu0 0.0
    %1321 = vmatpush1.msra.mxu0 0.0
    %1322 = vmatprep.subr.mxu0 0.0
    %1323 = vmatpush1.msra.mxu0 0.0
    %1324 = vmatprep.subr.mxu0 0.0
    %1325 = vmatpush1.msra.mxu0 0.0
    %1326 = vmatprep.subr.mxu0 0.0
    %1327 = vmatpush1.msra.mxu0 0.0
    %1328 = vmatprep.mubr.f32.mxu0 0.0
    %1329 = vmatmul.mubr.f32.gmra.mrb[0].mxu0 %v537
    %v1330 = vpop.f32.mrb[0].mxu0
    %v1331 = vadd.f32 0.0, %v1330
    %v1332 = vpop.f32.mrb[0].mxu0
    %1333 = vmatprep.mubr.f32.mxu0 0.0
    %1334 = vmatmul.mubr.f32.gmra.mrb[0].mxu0 %v540
    %v1335 = vpop.f32.mrb[0].mxu0
    %v1336 = vadd.f32 0.0, %v1335
    %v1337 = vpop.f32.mrb[0].mxu0
    %1338 = vmatprep.mubr.f32.mxu0 0.0
    %1339 = vmatmul.mubr.f32.gmra.mrb[0].mxu0 %v543
    %v1340 = vpop.f32.mrb[0].mxu0
    %v1341 = vadd.f32 0.0, %v1340
    %v1342 = vpop.f32.mrb[0].mxu0
    %1343 = vmatprep.mubr.f32.mxu0 0.0
    %1344 = vmatmul.mubr.f32.gmra.mrb[0].mxu0 %v546
    %v1345 = vpop.f32.mrb[0].mxu0
    %v1346 = vadd.f32 0.0, %v1345
    %v1347 = vpop.f32.mrb[0].mxu0
    %1348 = vmatprep.mubr.f32.mxu0 0.0
    %1349 = vmatmul.mubr.f32.gmra.mrb[0].mxu0 %v549
    %v1350 = vpop.f32.mrb[0].mxu0
    %v1351 = vadd.f32 0.0, %v1350
    %v1352 = vpop.f32.mrb[0].mxu0
    %1353 = vmatprep.mubr.f32.mxu0 0.0
    %1354 = vmatmul.mubr.f32.gmra.mrb[0].mxu0 %v552
    %v1355 = vpop.f32.mrb[0].mxu0
    %v1356 = vadd.f32 0.0, %v1355
    %v1357 = vpop.f32.mrb[0].mxu0
    %1358 = vmatprep.mubr.f32.mxu0 0.0
    %1359 = vmatmul.mubr.f32.gmra.mrb[0].mxu0 %v555
    %v1360 = vpop.f32.mrb[0].mxu0
    %v1361 = vadd.f32 0.0, %v1360
    %v1362 = vpop.f32.mrb[0].mxu0
    %1363 = vmatprep.mubr.f32.mxu0 0.0
    %1364 = vmatmul.mubr.f32.gmra.mrb[0].mxu0 %v558
    %v1365 = vpop.f32.mrb[0].mxu0
    %v1366 = vadd.f32 0.0, %v1365
    %v1367 = vpop.f32.mrb[0].mxu0
    %1368 = vmatprep.mubr.f32.mxu0 0.0
    %1369 = vmatmul.mubr.f32.gmra.mrb[0].mxu0 %v561
    %v1370 = vpop.f32.mrb[0].mxu0
    %v1371 = vadd.f32 0.0, %v1370
    %v1372 = vpop.f32.mrb[0].mxu0
    %1373 = vmatprep.mubr.f32.mxu0 0.0
    %1374 = vmatmul.mubr.f32.gmra.mrb[0].mxu0 %v564
    %v1375 = vpop.f32.mrb[0].mxu0
    %v1376 = vadd.f32 0.0, %v1375
    %v1377 = vpop.f32.mrb[0].mxu0
    %1378 = vmatprep.mubr.f32.mxu0 0.0
    %1379 = vmatmul.mubr.f32.gmra.mrb[0].mxu0 %v567
    %v1380 = vpop.f32.mrb[0].mxu0
    %v1381 = vadd.f32 0.0, %v1380
    %v1382 = vpop.f32.mrb[0].mxu0
    %1383 = vmatprep.mubr.f32.mxu0 0.0
    %1384 = vmatmul.mubr.f32.gmra.mrb[0].mxu0 %v570
    %v1385 = vpop.f32.mrb[0].mxu0
    %v1386 = vadd.f32 0.0, %v1385
    %v1387 = vpop.f32.mrb[0].mxu0
    %1388 = vmatprep.mubr.f32.mxu0 0.0
    %1389 = vmatmul.mubr.f32.gmra.mrb[0].mxu0 %v573
    %v1390 = vpop.f32.mrb[0].mxu0
    %v1391 = vadd.f32 0.0, %v1390
    %v1392 = vpop.f32.mrb[0].mxu0
    %1393 = vmatprep.mubr.f32.mxu0 0.0
    %1394 = vmatmul.mubr.f32.gmra.mrb[0].mxu0 %v576
    %v1395 = vpop.f32.mrb[0].mxu0
    %v1396 = vadd.f32 0.0, %v1395
    %v1397 = vpop.f32.mrb[0].mxu0
    %1398 = vmatprep.mubr.f32.mxu0 0.0
    %1399 = vmatmul.mubr.f32.gmra.mrb[0].mxu0 %v579
    %v1400 = vpop.f32.mrb[0].mxu0
    %v1401 = vadd.f32 0.0, %v1400
    %v1402 = vpop.f32.mrb[0].mxu0
    %1403 = vmatprep.mubr.f32.mxu0 0.0
    %1404 = vmatmul.mubr.f32.gmra.mrb[0].mxu0 %v582
    %v1405 = vpop.f32.mrb[0].mxu0
    %v1406 = vadd.f32 0.0, %v1405
    %v1407 = vpop.f32.mrb[0].mxu0
    %1408 = vdwg.mxu0
    %v1409 = vadd.f32 %v1186, %v1331
    %v1410 = vadd.f32 %v1191, %v1336
    %v1411 = vadd.f32 %v1196, %v1341
    %v1412 = vadd.f32 %v1201, %v1346
    %v1413 = vadd.f32 %v1206, %v1351
    %v1414 = vadd.f32 %v1211, %v1356
    %v1415 = vadd.f32 %v1216, %v1361
    %v1416 = vadd.f32 %v1221, %v1366
    %v1417 = vadd.f32 %v1226, %v1371
    %v1418 = vadd.f32 %v1231, %v1376
    %v1419 = vadd.f32 %v1236, %v1381
    %v1420 = vadd.f32 %v1241, %v1386
    %v1421 = vadd.f32 %v1246, %v1391
    %v1422 = vadd.f32 %v1251, %v1396
    %v1423 = vadd.f32 %v1256, %v1401
    %v1424 = vadd.f32 %v1261, %v1406
    %v1425 = vlaneseq
    %v1426 = vshrl.u32 %v1425, 7
    %v1427 = vsub.s32 0, %v1426
    %v1428 = vrot.slane %v89, %v1427
    %v1429 = vadd.f32 %v1409, %v1428
    %v1430 = vadd.f32 %v1410, %v1428
    %v1431 = vadd.f32 %v1411, %v1428
    %v1432 = vadd.f32 %v1412, %v1428
    %v1433 = vadd.f32 %v1413, %v1428
    %v1434 = vadd.f32 %v1414, %v1428
    %v1435 = vadd.f32 %v1415, %v1428
    %v1436 = vadd.f32 %v1416, %v1428
    %v1437 = vadd.f32 %v1417, %v1428
    %v1438 = vadd.f32 %v1418, %v1428
    %v1439 = vadd.f32 %v1419, %v1428
    %v1440 = vadd.f32 %v1420, %v1428
    %v1441 = vadd.f32 %v1421, %v1428
    %v1442 = vadd.f32 %v1422, %v1428
    %v1443 = vadd.f32 %v1423, %v1428
    %v1444 = vadd.f32 %v1424, %v1428
    %v1445 = vmax.f32 %v1429, 0.0
    %v1446 = vmax.f32 %v1430, 0.0
    %v1447 = vmax.f32 %v1431, 0.0
    %v1448 = vmax.f32 %v1432, 0.0
    %v1449 = vmax.f32 %v1433, 0.0
    %v1450 = vmax.f32 %v1434, 0.0
    %v1451 = vmax.f32 %v1435, 0.0
    %v1452 = vmax.f32 %v1436, 0.0
    %v1453 = vmax.f32 %v1437, 0.0
    %v1454 = vmax.f32 %v1438, 0.0
    %v1455 = vmax.f32 %v1439, 0.0
    %v1456 = vmax.f32 %v1440, 0.0
    %v1457 = vmax.f32 %v1441, 0.0
    %v1458 = vmax.f32 %v1442, 0.0
    %v1459 = vmax.f32 %v1443, 0.0
    %v1460 = vmax.f32 %v1444, 0.0
    %1461 = vmatprep.subr.mxu0 0.0
    %1462 = vmatpush1.xpose.msra.mxu0 %v1445
    %1463 = vmatprep.subr.mxu0 0.0
    %1464 = vmatpush1.xpose.msra.mxu0 %v1446
    %1465 = vmatprep.subr.mxu0 0.0
    %1466 = vmatpush1.xpose.msra.mxu0 %v1447
    %1467 = vmatprep.subr.mxu0 0.0
    %1468 = vmatpush1.xpose.msra.mxu0 %v1448
    %1469 = vmatprep.subr.mxu0 0.0
    %1470 = vmatpush1.xpose.msra.mxu0 %v1449
    %1471 = vmatprep.subr.mxu0 0.0
    %1472 = vmatpush1.xpose.msra.mxu0 %v1450
    %1473 = vmatprep.subr.mxu0 0.0
    %1474 = vmatpush1.xpose.msra.mxu0 %v1451
    %1475 = vmatprep.subr.mxu0 0.0
    %1476 = vmatpush1.xpose.msra.mxu0 %v1452
    %1477 = vmatprep.subr.mxu0 0.0
    %1478 = vmatpush1.xpose.msra.mxu0 %v1453
    %1479 = vmatprep.subr.mxu0 0.0
    %1480 = vmatpush1.xpose.msra.mxu0 %v1454
    %1481 = vmatprep.subr.mxu0 0.0
    %1482 = vmatpush1.xpose.msra.mxu0 %v1455
    %1483 = vmatprep.subr.mxu0 0.0
    %1484 = vmatpush1.xpose.msra.mxu0 %v1456
    %1485 = vmatprep.subr.mxu0 0.0
    %1486 = vmatpush1.xpose.msra.mxu0 %v1457
    %1487 = vmatprep.subr.mxu0 0.0
    %1488 = vmatpush1.xpose.msra.mxu0 %v1458
    %1489 = vmatprep.subr.mxu0 0.0
    %1490 = vmatpush1.xpose.msra.mxu0 %v1459
    %1491 = vmatprep.subr.mxu0 0.0
    %1492 = vmatpush1.xpose.msra.mxu0 %v1460
    %1493 = vmatprep.subr.mxu0 0.0
    %1494 = vmatpush1.xpose.msra.mxu0 0.0
    %1495 = vmatprep.subr.mxu0 0.0
    %1496 = vmatpush1.xpose.msra.mxu0 0.0
    %1497 = vmatprep.subr.mxu0 0.0
    %1498 = vmatpush1.xpose.msra.mxu0 0.0
    %1499 = vmatprep.subr.mxu0 0.0
    %1500 = vmatpush1.xpose.msra.mxu0 0.0
    %1501 = vmatprep.subr.mxu0 0.0
    %1502 = vmatpush1.xpose.msra.mxu0 0.0
    %1503 = vmatprep.subr.mxu0 0.0
    %1504 = vmatpush1.xpose.msra.mxu0 0.0
    %1505 = vmatprep.subr.mxu0 0.0
    %1506 = vmatpush1.xpose.msra.mxu0 0.0
    %1507 = vmatprep.subr.mxu0 0.0
    %1508 = vmatpush1.xpose.msra.mxu0 0.0
    %1509 = vmatprep.subr.mxu0 0.0
    %1510 = vmatpush1.xpose.msra.mxu0 0.0
    %1511 = vmatprep.subr.mxu0 0.0
    %1512 = vmatpush1.xpose.msra.mxu0 0.0
    %1513 = vmatprep.subr.mxu0 0.0
    %1514 = vmatpush1.xpose.msra.mxu0 0.0
    %1515 = vmatprep.subr.mxu0 0.0
    %1516 = vmatpush1.xpose.msra.mxu0 0.0
    %1517 = vmatprep.subr.mxu0 0.0
    %1518 = vmatpush1.xpose.msra.mxu0 0.0
    %1519 = vmatprep.subr.mxu0 0.0
    %1520 = vmatpush1.xpose.msra.mxu0 0.0
    %1521 = vmatprep.subr.mxu0 0.0
    %1522 = vmatpush1.xpose.msra.mxu0 0.0
    %1523 = vmatprep.subr.mxu0 0.0
    %1524 = vmatpush1.xpose.msra.mxu0 0.0
    %1525 = vmatprep.mubr.f32.mxu0 0.0
    %1526 = vmatmul.mubr.f32.gmra.mrb[0].mxu0 %v85
    %v1527 = vpop.f32.mrb[0].mxu0
    %v1528 = vadd.f32 0.0, %v1527
    %v1529 = vpop.f32.mrb[0].mxu0
    %1530 = vdwg.mxu0
    %s1531 = sld [smem:[#allocation2]]
    %v1532 = vstv %s1531
    %v1533 = vadd.f32 %v1528, %v1532
    %1534 = vst [vmem:[#allocation3] sm:$0x1] %v1533
    // Predicated region
    $region22: #{tpu_custom_call.1} parent=1 // pred_check
      _
    $region23: #{tpu_custom_call.1} parent=1 // pred_check_branch
      %1536 = sbr.rel (0) target = $region25
    $region24: #{tpu_custom_call.1} parent=1 // pred_region
      %s1538 = ssub.s32 16, 16
      %1539 = vsyncadd [#allocation4], %s1538
      %s1541 = sshll.u32 [#allocation3], 4
      %s1542 = int_to_ptr.vmem [resolvable:$true] %s1541
      %1544 = dma.vmem_to_hbm [thread:$0]  %s1542, 16, %s5, [#allocation4]
    $region25: #{tpu_custom_call.1} parent=1 // pred_fallthru
      _
    // Predicated region
    $region26: #{tpu_custom_call.1} parent=1 // pred_check
      _
    $region27: #{tpu_custom_call.1} parent=1 // pred_check_branch
      %1546 = sbr.rel (0) target = $region29
    $region28: #{tpu_custom_call.1} parent=1 // pred_region
      %1547 = dma.done [#allocation4], 16
    $region29: #{tpu_custom_call.1} parent=1 // pred_fallthru
      _
    %1548 = vsyncpa [#allocation4], 1

</llo_original>
